<compile_context>
chip_gen: v5e
topology: v5e:2x2
jax: 0.10.0
libtpu: 0.0.40
codegen_flags: <defaults>
</compile_context>

<pallas_src>
import functools

import jax
import jax.numpy as jnp
from jax import lax
from jax.experimental import pallas as pl
from jax.experimental.pallas import tpu as pltpu

F32 = jnp.float32
_USED_PENALTY = 1e9     # added to the cost of already-matched queries


# ----------------------------------------------------------------------------
# Fused criterion kernel: one grid step = one prediction level
# ----------------------------------------------------------------------------
def _criterion_kernel(
    # scalar-prefetch refs (SMEM)
    counts_ref,      # (B,)      int32   #targets per batch element
    labels_ref,      # (B*T,)    int32   padded target labels (row-major b, j)
    vis_ref,         # (B,)      int32
    tboxes_ref,      # (B*T*4,)  float32 padded target boxes (cx, cy, w, h)
    # VMEM inputs (key-frame gathered, queries on lanes)
    logits_ref,      # (1, B, C1, Q)
    boxes_ref,       # (1, B, 4, Q)
    logits_b_ref,    # (1, B, Cb)
    # output
    out_ref,         # (1, 1, 128)   lane-packed per-level sums
    *, num_classes, num_queries, eos_coef, t_max, batch_size, unroll,
):
    Q = num_queries
    C1 = num_classes + 1
    T = t_max
    B = batch_size
    Cb = logits_b_ref.shape[-1]

    lane_f = lax.broadcasted_iota(jnp.int32, (1, Q), 1).astype(F32)   # query idx per lane
    sub_i = lax.broadcasted_iota(jnp.int32, (C1, Q), 0)               # class idx per sublane
    sub_f = sub_i.astype(F32)
    lane_b = lax.broadcasted_iota(jnp.int32, (1, Cb), 1)

    ce_num = jnp.zeros((1, 1), F32); ce_den = jnp.zeros((1, 1), F32)
    ceb_num = jnp.zeros((1, 1), F32); ceb_den = jnp.zeros((1, 1), F32)
    acc_num = jnp.zeros((1, 1), F32); acc_den = jnp.zeros((1, 1), F32)
    l1_sum = jnp.zeros((1, 1), F32); giou_sum = jnp.zeros((1, 1), F32)

    for b in range(B):                                  # B is a small static constant
        logits = logits_ref[0, b].astype(F32)           # (C1, Q)
        pbox = boxes_ref[0, b].astype(F32)               # (4, Q)
        px_cx = pbox[0:1, :]; px_cy = pbox[1:2, :]
        px_w = pbox[2:3, :]; px_h = pbox[3:4, :]
        sx0 = px_cx - 0.5 * px_w; sy0 = px_cy - 0.5 * px_h
        sx1 = px_cx + 0.5 * px_w; sy1 = px_cy + 0.5 * px_h
        area_s = (sx1 - sx0) * (sy1 - sy0)

        # softmax statistics over classes (sublane axis)
        mx = jnp.max(logits, axis=0, keepdims=True)      # (1,Q)
        ex = jnp.exp(logits - mx)                        # (C1,Q)
        z = jnp.sum(ex, axis=0, keepdims=True)           # (1,Q)
        lse = mx + jnp.log(z)                            # (1,Q)
        inv_z = pl.reciprocal(z, approx=True)            # EUP; matcher cost only

        count_b = jnp.minimum(counts_ref[b], Q)          # never match more targets than queries

        # ---- greedy matcher: cost = -p_class + 5*L1 - 2*GIoU (DETR defaults) ----
        # TODO(synk): exact Hungarian assignment (scipy linear_sum_assignment) has
        # no Pallas equivalent; greedy per-target argmin over unused queries is used.
        def matcher_body(j, carry):
            (used_pen, m_mask, m_logit, m_label, mtb0, mtb1, mtb2, mtb3) = carry
            validf = (j < count_b).astype(F32)
            label_j = labels_ref[b * T + j]
            base = (b * T + j) * 4
            t_cx = tboxes_ref[base + 0]; t_cy = tboxes_ref[base + 1]
            t_w = tboxes_ref[base + 2]; t_h = tboxes_ref[base + 3]

            cls_mask = (sub_i == label_j).astype(F32)                        # (C1,Q)
            logit_j = jnp.sum(logits * cls_mask, axis=0, keepdims=True)      # (1,Q)
            p_j = jnp.sum(ex * cls_mask, axis=0, keepdims=True) * inv_z      # (1,Q)

            l1_j = (jnp.abs(px_cx - t_cx) + jnp.abs(px_cy - t_cy)
                    + jnp.abs(px_w - t_w) + jnp.abs(px_h - t_h))             # (1,Q)

            tx0 = t_cx - 0.5 * t_w; ty0 = t_cy - 0.5 * t_h
            tx1 = t_cx + 0.5 * t_w; ty1 = t_cy + 0.5 * t_h
            area_t = (tx1 - tx0) * (ty1 - ty0)
            iw = jnp.maximum(jnp.minimum(sx1, tx1) - jnp.maximum(sx0, tx0), 0.0)
            ih = jnp.maximum(jnp.minimum(sy1, ty1) - jnp.maximum(sy0, ty0), 0.0)
            inter = iw * ih
            union = jnp.maximum(area_s + area_t - inter, 1e-12)
            ew = jnp.maximum(sx1, tx1) - jnp.minimum(sx0, tx0)
            eh = jnp.maximum(sy1, ty1) - jnp.minimum(sy0, ty0)
            encl = jnp.maximum(ew * eh, 1e-12)
            giou_j = inter / union - (encl - union) / encl

            cost = -p_j + 5.0 * l1_j - 2.0 * giou_j + used_pen               # (1,Q)
            cmin = jnp.min(cost, axis=1, keepdims=True)
            src = jnp.min(jnp.where(cost <= cmin, lane_f, jnp.float32(Q)),
                          axis=1, keepdims=True)                             # lowest-index argmin
            sel = (lane_f == src).astype(F32) * validf                       # (1,Q)

            return (used_pen + sel * _USED_PENALTY,
                    m_mask + sel,
                    m_logit + sel * logit_j,
                    m_label + sel * label_j.astype(F32),
                    mtb0 + sel * t_cx, mtb1 + sel * t_cy,
                    mtb2 + sel * t_w, mtb3 + sel * t_h)

        zero_row = jnp.zeros((1, Q), F32)
        (used_pen, m_mask, m_logit, m_label, mtb0, mtb1, mtb2, mtb3) = lax.fori_loop(
            0, T, matcher_body, (zero_row,) * 8, unroll=unroll)

        # ---- weighted classification CE over this element's Q key-frame queries ----
        noobj_logit = logits[num_classes:num_classes + 1, :]                 # (1,Q)
        tgt_logit = m_mask * m_logit + (1.0 - m_mask) * noobj_logit
        w_q = m_mask + (1.0 - m_mask) * eos_coef                             # empty_weight
        nll = lse - tgt_logit
        ce_num = ce_num + jnp.sum(w_q * nll, axis=1, keepdims=True)
        ce_den = ce_den + jnp.sum(w_q, axis=1, keepdims=True)

        # ---- top-1 accuracy over matched queries (class_error) ----
        argmax_f = jnp.min(jnp.where(logits >= mx, sub_f, jnp.float32(C1)),
                           axis=0, keepdims=True)                            # (1,Q)
        correct = (argmax_f == m_label).astype(F32) * m_mask
        acc_num = acc_num + jnp.sum(correct, axis=1, keepdims=True)
        acc_den = acc_den + jnp.sum(m_mask, axis=1, keepdims=True)

        # ---- binary visibility CE for row b of pred_logits_b ----
        lb = logits_b_ref[0, b:b + 1, :].astype(F32)                         # (1,Cb)
        mb = jnp.max(lb, axis=1, keepdims=True)
        lse_b = mb + jnp.log(jnp.sum(jnp.exp(lb - mb), axis=1, keepdims=True))
        oh_b = (lane_b == vis_ref[b]).astype(F32)
        ceb_num = ceb_num + lse_b - jnp.sum(lb * oh_b, axis=1, keepdims=True)
        ceb_den = ceb_den + 1.0

        # ---- box L1 + GIoU over matched (query, target) pairs ----
        diff = (jnp.abs(px_cx - mtb0) + jnp.abs(px_cy - mtb1)
                + jnp.abs(px_w - mtb2) + jnp.abs(px_h - mtb3)) * m_mask
        l1_sum = l1_sum + jnp.sum(diff, axis=1, keepdims=True)

        tx0 = mtb0 - 0.5 * mtb2; ty0 = mtb1 - 0.5 * mtb3
        tx1 = mtb0 + 0.5 * mtb2; ty1 = mtb1 + 0.5 * mtb3
        area_t = (tx1 - tx0) * (ty1 - ty0)
        iw = jnp.maximum(jnp.minimum(sx1, tx1) - jnp.maximum(sx0, tx0), 0.0)
        ih = jnp.maximum(jnp.minimum(sy1, ty1) - jnp.maximum(sy0, ty0), 0.0)
        inter = iw * ih
        union = area_s + area_t - inter
        ew = jnp.maximum(sx1, tx1) - jnp.minimum(sx0, tx0)
        eh = jnp.maximum(sy1, ty1) - jnp.minimum(sy0, ty0)
        encl = ew * eh
        union_s = jnp.where(m_mask > 0, jnp.maximum(union, 1e-12), 1.0)
        encl_s = jnp.where(m_mask > 0, jnp.maximum(encl, 1e-12), 1.0)
        giou = inter / union_s - (encl - union) / encl_s
        giou_sum = giou_sum + jnp.sum((1.0 - giou) * m_mask, axis=1, keepdims=True)

    # ---- pack the 8 per-level sums into one lane-dense row, single store ----
    lane128 = lax.broadcasted_iota(jnp.int32, (1, 128), 1)

    def put(k, v):                       # v: (1,1) -> (1,128) with v at lane k
        return v * (lane128 == k).astype(F32)

    packed = (put(0, ce_num) + put(1, ce_den) + put(2, ceb_num) + put(3, ceb_den)
              + put(4, acc_num) + put(5, acc_den) + put(6, l1_sum) + put(7, giou_sum))
    out_ref[...] = packed.reshape(1, 1, 128)


# ----------------------------------------------------------------------------
# SetCriterion (forward pass)
# ----------------------------------------------------------------------------
class SetCriterionPallas:
    def __init__(self, num_classes, num_queries, eos_coef, losses=("labels", "boxes")):
        self.num_classes = num_classes
        self.num_queries = num_queries
        self.eos_coef = float(eos_coef)
        self.losses = losses

    def _run_fused(self, logits_g, boxes_g, logits_b_lv,
                   counts, labels_flat, vis, tboxes_flat, t_max):
        L, B, C1, Q = logits_g.shape
        Cb = logits_b_lv.shape[-1]

        kernel = functools.partial(
            _criterion_kernel,
            num_classes=self.num_classes, num_queries=Q, eos_coef=self.eos_coef,
            t_max=t_max, batch_size=B,
            unroll=True if t_max <= 8 else 2)

        grid_spec = pltpu.PrefetchScalarGridSpec(
            num_scalar_prefetch=4,              # counts, labels, vis, tboxes
            grid=(L,),
            in_specs=[
                pl.BlockSpec((1, B, C1, Q), lambda l, cnt, lab, vs, tb: (l, 0, 0, 0)),
                pl.BlockSpec((1, B, 4, Q), lambda l, cnt, lab, vs, tb: (l, 0, 0, 0)),
                pl.BlockSpec((1, B, Cb), lambda l, cnt, lab, vs, tb: (l, 0, 0)),
            ],
            out_specs=pl.BlockSpec((1, 1, 128), lambda l, cnt, lab, vs, tb: (l, 0, 0)),
        )

        return pl.pallas_call(
            kernel,
            grid_spec=grid_spec,
            out_shape=jax.ShapeDtypeStruct((L, 1, 128), F32),
            compiler_params=pltpu.CompilerParams(
                dimension_semantics=("parallel",)),
        )(counts, labels_flat, vis, tboxes_flat, logits_g, boxes_g, logits_b_lv)

    def forward(self, outputs, targets):
        levels = [outputs] + list(outputs.get("aux_outputs", []))
        L = len(levels)
        Q = self.num_queries
        logits_lv = jnp.stack([lv["pred_logits"].astype(F32) for lv in levels])     # (L,B,S,C1)
        boxes_lv = jnp.stack([lv["pred_boxes"].astype(F32) for lv in levels])       # (L,B,S,4)
        logits_b_lv = jnp.stack([lv["pred_logits_b"].astype(F32) for lv in levels]) # (L,B,Cb)
        B = logits_lv.shape[1]
        C1 = logits_lv.shape[-1]

        key_pos = jnp.stack([jnp.asarray(t["key_pos"], jnp.int32).reshape(()) for t in targets])
        vis = jnp.stack([jnp.asarray(t["vis"], jnp.int32).reshape(()) for t in targets])
        counts_py = [int(t["labels"].shape[0]) for t in targets]
        num_boxes = sum(counts_py)
        t_max = max(max(counts_py), 1)
        counts = jnp.asarray(counts_py, jnp.int32)
        labels_flat = jnp.stack(
            [jnp.pad(jnp.asarray(t["labels"], jnp.int32), (0, t_max - c))
             for t, c in zip(targets, counts_py)]).reshape(-1)                      # (B*T,)
        tboxes_flat = jnp.stack(
            [jnp.pad(jnp.asarray(t["boxes"], F32)[:, 1:], ((0, t_max - c), (0, 0)))
             for t, c in zip(targets, counts_py)]).reshape(-1)                      # (B*T*4,)

        # key-frame gather (tiny, XLA-side) + transpose so queries sit on lanes
        idx = key_pos[:, None] * Q + jnp.arange(Q, dtype=jnp.int32)[None, :]        # (B,Q)
        logits_g = jnp.take_along_axis(
            logits_lv, jnp.broadcast_to(idx[None, :, :, None], (L, B, Q, C1)), axis=2)
        boxes_g = jnp.take_along_axis(
            boxes_lv, jnp.broadcast_to(idx[None, :, :, None], (L, B, Q, 4)), axis=2)
        logits_g = jnp.swapaxes(logits_g, 2, 3)                                     # (L,B,C1,Q)
        boxes_g = jnp.swapaxes(boxes_g, 2, 3)                                       # (L,B,4,Q)

        sums = self._run_fused(logits_g, boxes_g, logits_b_lv,
                               counts, labels_flat, vis, tboxes_flat, t_max)[:, 0, :]  # (L,128)

        def level_losses(lvl, log):
            s = sums[lvl]
            out = {}
            if "labels" in self.losses:
                out["loss_ce"] = s[0] / s[1]
                out["loss_ce_b"] = s[2] / s[3]
                if log:
                    out["class_error"] = 100.0 - 100.0 * s[4] / jnp.maximum(s[5], 1.0)
            if "boxes" in self.losses:
                if num_boxes > 0:
                    out["loss_bbox"] = s[6] / num_boxes
                    out["loss_giou"] = s[7] / num_boxes
                else:
                    # TODO(synk): reference returns F.l1_loss of equal dummy tensors (== 0)
                    out["loss_bbox"] = jnp.zeros((), F32)
                    out["loss_giou"] = jnp.zeros((), F32)
            # TODO(synk): 'masks' loss (interpolate + sigmoid focal + dice) and the
            # 'cardinality' logging metric are not implemented.
            return out

        losses = dict(level_losses(0, log=True))
        for i in range(1, L):                 # aux levels (log=False), suffix _{i-1}
            for k, v in level_losses(i, log=False).items():
                losses[f"{k}_{i - 1}"] = v
        return losses


# ----------------------------------------------------------------------------
# Demo
# ----------------------------------------------------------------------------
if __name__ == "__main__":
    key = jax.random.PRNGKey(0)
    B, num_frames, Q, num_classes = 2, 4, 8, 2
    C1 = num_classes + 1
    ks = jax.random.split(key, 10)

    pred_logits = jax.random.normal(ks[0], (B, num_frames * Q, C1), F32)
    pred_boxes = jax.random.uniform(ks[1], (B, num_frames * Q, 4), F32, 0.1, 0.6)
    pred_logits_b = jax.random.normal(ks[2], (B, 2), F32)
    aux = {
        "pred_logits": jax.random.normal(ks[3], (B, num_frames * Q, C1), F32),
        "pred_boxes": jax.random.uniform(ks[4], (B, num_frames * Q, 4), F32, 0.1, 0.6),
        "pred_logits_b": jax.random.normal(ks[5], (B, 2), F32),
    }
    outputs = {
        "pred_logits": pred_logits,
        "pred_boxes": pred_boxes,
        "pred_logits_b": pred_logits_b,
        "aux_outputs": [aux],
    }

    def make_target(k, n_tgt, key_pos, vis):
        k0, k1, k2 = jax.random.split(k, 3)
        labels = jax.random.randint(k0, (n_tgt,), 0, num_classes)
        boxes = jnp.concatenate(
            [jnp.zeros((n_tgt, 1), F32),                                  # leading column (stripped by [:,1:])
             jax.random.uniform(k1, (n_tgt, 2), F32, 0.3, 0.7),           # cx, cy
             jax.random.uniform(k2, (n_tgt, 2), F32, 0.1, 0.3)], axis=1)  # w, h
        return {"labels": labels, "boxes": boxes,
                "vis": jnp.array(vis, jnp.int32),
                "key_pos": jnp.array(key_pos, jnp.int32)}

    targets = [make_target(ks[6], 2, 1, 1), make_target(ks[7], 1, 2, 1)]

    criterion = SetCriterionPallas(num_classes=num_classes, num_queries=Q, eos_coef=0.1)
    losses = criterion.forward(outputs, targets)
    losses = jax.tree.map(jax.block_until_ready, losses)
    print("KERNEL_OK")
</pallas_src>

<mosaic_0001>
module attributes {stable_mosaic.version = 11 : i64} {
  func.func @_criterion_kernel(%arg0: i32, %arg1: memref<2xi32, #tpu.memory_space<smem>>, %arg2: memref<4xi32, #tpu.memory_space<smem>>, %arg3: memref<2xi32, #tpu.memory_space<smem>>, %arg4: memref<16xf32, #tpu.memory_space<smem>>, %arg5: memref<1x2x3x8xf32, #tpu.memory_space<vmem>>, %arg6: memref<1x2x4x8xf32, #tpu.memory_space<vmem>>, %arg7: memref<1x2x2xf32, #tpu.memory_space<vmem>>, %arg8: memref<1x1x128xf32, #tpu.memory_space<vmem>>) attributes {dimension_semantics = [#tpu.dimension_semantics<parallel>], iteration_bounds = array<i64: 2>, scalar_prefetch = 4 : i64, scratch_operands = 0 : i64, tpu.core_type = #tpu.core_type<tc>, window_params = [{transform_indices = @transform_0, window_bounds = array<i64: 1, 2, 3, 8>}, {transform_indices = @transform_1, window_bounds = array<i64: 1, 2, 4, 8>}, {transform_indices = @transform_2, window_bounds = array<i64: 1, 2, 2>}, {transform_indices = @transform_3, window_bounds = array<i64: 1, 1, 128>}]} {
    %0 = tpu.iota {dimensions = array<i32: 1>} : vector<1x8xi32>
    %1 = arith.sitofp %0 : vector<1x8xi32> to vector<1x8xf32>
    %2 = tpu.iota {dimensions = array<i32: 0>} : vector<3x8xi32>
    %3 = arith.sitofp %2 : vector<3x8xi32> to vector<3x8xf32>
    %4 = tpu.iota {dimensions = array<i32: 1>} : vector<1x2xi32>
    %cst = arith.constant 0.000000e+00 : f32
    %5 = vector.broadcast %cst : f32 to vector<1x1xf32>
    %cst_0 = arith.constant 0.000000e+00 : f32
    %6 = vector.broadcast %cst_0 : f32 to vector<1x1xf32>
    %cst_1 = arith.constant 0.000000e+00 : f32
    %7 = vector.broadcast %cst_1 : f32 to vector<1x1xf32>
    %cst_2 = arith.constant 0.000000e+00 : f32
    %8 = vector.broadcast %cst_2 : f32 to vector<1x1xf32>
    %cst_3 = arith.constant 0.000000e+00 : f32
    %9 = vector.broadcast %cst_3 : f32 to vector<1x1xf32>
    %cst_4 = arith.constant 0.000000e+00 : f32
    %10 = vector.broadcast %cst_4 : f32 to vector<1x1xf32>
    %cst_5 = arith.constant 0.000000e+00 : f32
    %11 = vector.broadcast %cst_5 : f32 to vector<1x1xf32>
    %cst_6 = arith.constant 0.000000e+00 : f32
    %12 = vector.broadcast %cst_6 : f32 to vector<1x1xf32>
    %c0 = arith.constant 0 : index
    %c0_7 = arith.constant 0 : index
    %c0_8 = arith.constant 0 : index
    %c0_9 = arith.constant 0 : index
    %13 = vector.load %arg5[%c0, %c0_7, %c0_8, %c0_9] : memref<1x2x3x8xf32, #tpu.memory_space<vmem>>, vector<1x1x3x8xf32>
    %14 = vector.shape_cast %13 : vector<1x1x3x8xf32> to vector<3x8xf32>
    %c0_10 = arith.constant 0 : index
    %c0_11 = arith.constant 0 : index
    %c0_12 = arith.constant 0 : index
    %c0_13 = arith.constant 0 : index
    %15 = vector.load %arg6[%c0_10, %c0_11, %c0_12, %c0_13] : memref<1x2x4x8xf32, #tpu.memory_space<vmem>>, vector<1x1x4x8xf32>
    %16 = vector.shape_cast %15 : vector<1x1x4x8xf32> to vector<4x8xf32>
    %17 = vector.extract_strided_slice %16 {offsets = [0, 0], sizes = [1, 8], strides = [1, 1]} : vector<4x8xf32> to vector<1x8xf32>
    %18 = vector.extract_strided_slice %16 {offsets = [1, 0], sizes = [1, 8], strides = [1, 1]} : vector<4x8xf32> to vector<1x8xf32>
    %19 = vector.extract_strided_slice %16 {offsets = [2, 0], sizes = [1, 8], strides = [1, 1]} : vector<4x8xf32> to vector<1x8xf32>
    %20 = vector.extract_strided_slice %16 {offsets = [3, 0], sizes = [1, 8], strides = [1, 1]} : vector<4x8xf32> to vector<1x8xf32>
    %cst_14 = arith.constant 5.000000e-01 : f32
    %21 = vector.broadcast %cst_14 : f32 to vector<1x8xf32>
    %22 = arith.mulf %21, %19 : vector<1x8xf32>
    %23 = arith.subf %17, %22 : vector<1x8xf32>
    %cst_15 = arith.constant 5.000000e-01 : f32
    %24 = vector.broadcast %cst_15 : f32 to vector<1x8xf32>
    %25 = arith.mulf %24, %20 : vector<1x8xf32>
    %26 = arith.subf %18, %25 : vector<1x8xf32>
    %cst_16 = arith.constant 5.000000e-01 : f32
    %27 = vector.broadcast %cst_16 : f32 to vector<1x8xf32>
    %28 = arith.mulf %27, %19 : vector<1x8xf32>
    %29 = arith.addf %17, %28 : vector<1x8xf32>
    %cst_17 = arith.constant 5.000000e-01 : f32
    %30 = vector.broadcast %cst_17 : f32 to vector<1x8xf32>
    %31 = arith.mulf %30, %20 : vector<1x8xf32>
    %32 = arith.addf %18, %31 : vector<1x8xf32>
    %33 = arith.subf %29, %23 : vector<1x8xf32>
    %34 = arith.subf %32, %26 : vector<1x8xf32>
    %35 = arith.mulf %33, %34 : vector<1x8xf32>
    %cst_18 = arith.constant dense<0xFF800000> : vector<8xf32>
    %36 = vector.multi_reduction <maximumf>, %14, %cst_18 [0] : vector<3x8xf32> to vector<8xf32>
    %37 = vector.shape_cast %36 : vector<8xf32> to vector<1x8xf32>
    %38 = vector.broadcast %37 : vector<1x8xf32> to vector<3x8xf32>
    %39 = arith.subf %14, %38 : vector<3x8xf32>
    %40 = math.exp %39 : vector<3x8xf32>
    %cst_19 = arith.constant dense<0.000000e+00> : vector<8xf32>
    %41 = vector.multi_reduction <add>, %40, %cst_19 [0] : vector<3x8xf32> to vector<8xf32>
    %42 = vector.shape_cast %41 : vector<8xf32> to vector<1x8xf32>
    %43 = math.log %42 : vector<1x8xf32>
    %44 = arith.addf %37, %43 : vector<1x8xf32>
    %45 = tpu.reciprocal %42 {approx = true} : vector<1x8xf32> -> vector<1x8xf32>
    %c0_20 = arith.constant 0 : index
    %46 = memref.load %arg1[%c0_20] : memref<2xi32, #tpu.memory_space<smem>>
    %c8_i32 = arith.constant 8 : i32
    %47 = arith.minsi %46, %c8_i32 : i32
    %cst_21 = arith.constant 0.000000e+00 : f32
    %48 = vector.broadcast %cst_21 : f32 to vector<1x8xf32>
    %c0_i32 = arith.constant 0 : i32
    %49 = arith.cmpi slt, %c0_i32, %47 : i32
    %50 = arith.extui %49 : i1 to i32
    %51 = arith.sitofp %50 : i32 to f32
    %c0_i32_22 = arith.constant 0 : i32
    %52 = arith.addi %c0_i32_22, %c0_i32 : i32
    %53 = arith.index_cast %52 : i32 to index
    %54 = memref.load %arg2[%53] : memref<4xi32, #tpu.memory_space<smem>>
    %c0_i32_23 = arith.constant 0 : i32
    %55 = arith.addi %c0_i32_23, %c0_i32 : i32
    %c4_i32 = arith.constant 4 : i32
    %56 = arith.muli %55, %c4_i32 : i32
    %c0_i32_24 = arith.constant 0 : i32
    %57 = arith.addi %56, %c0_i32_24 : i32
    %58 = arith.index_cast %57 : i32 to index
    %59 = memref.load %arg4[%58] : memref<16xf32, #tpu.memory_space<smem>>
    %c1_i32 = arith.constant 1 : i32
    %60 = arith.addi %56, %c1_i32 : i32
    %61 = arith.index_cast %60 : i32 to index
    %62 = memref.load %arg4[%61] : memref<16xf32, #tpu.memory_space<smem>>
    %c2_i32 = arith.constant 2 : i32
    %63 = arith.addi %56, %c2_i32 : i32
    %64 = arith.index_cast %63 : i32 to index
    %65 = memref.load %arg4[%64] : memref<16xf32, #tpu.memory_space<smem>>
    %c3_i32 = arith.constant 3 : i32
    %66 = arith.addi %56, %c3_i32 : i32
    %67 = arith.index_cast %66 : i32 to index
    %68 = memref.load %arg4[%67] : memref<16xf32, #tpu.memory_space<smem>>
    %69 = vector.broadcast %54 : i32 to vector<3x8xi32>
    %70 = arith.cmpi eq, %2, %69 : vector<3x8xi32>
    %71 = arith.extui %70 : vector<3x8xi1> to vector<3x8xi32>
    %72 = arith.sitofp %71 : vector<3x8xi32> to vector<3x8xf32>
    %73 = arith.mulf %14, %72 : vector<3x8xf32>
    %cst_25 = arith.constant dense<0.000000e+00> : vector<8xf32>
    %74 = vector.multi_reduction <add>, %73, %cst_25 [0] : vector<3x8xf32> to vector<8xf32>
    %75 = vector.shape_cast %74 : vector<8xf32> to vector<1x8xf32>
    %76 = arith.mulf %40, %72 : vector<3x8xf32>
    %cst_26 = arith.constant dense<0.000000e+00> : vector<8xf32>
    %77 = vector.multi_reduction <add>, %76, %cst_26 [0] : vector<3x8xf32> to vector<8xf32>
    %78 = vector.shape_cast %77 : vector<8xf32> to vector<1x8xf32>
    %79 = arith.mulf %78, %45 : vector<1x8xf32>
    %80 = vector.broadcast %59 : f32 to vector<1x8xf32>
    %81 = arith.subf %17, %80 : vector<1x8xf32>
    %82 = math.absf %81 : vector<1x8xf32>
    %83 = vector.broadcast %62 : f32 to vector<1x8xf32>
    %84 = arith.subf %18, %83 : vector<1x8xf32>
    %85 = math.absf %84 : vector<1x8xf32>
    %86 = arith.addf %82, %85 : vector<1x8xf32>
    %87 = vector.broadcast %65 : f32 to vector<1x8xf32>
    %88 = arith.subf %19, %87 : vector<1x8xf32>
    %89 = math.absf %88 : vector<1x8xf32>
    %90 = arith.addf %86, %89 : vector<1x8xf32>
    %91 = vector.broadcast %68 : f32 to vector<1x8xf32>
    %92 = arith.subf %20, %91 : vector<1x8xf32>
    %93 = math.absf %92 : vector<1x8xf32>
    %94 = arith.addf %90, %93 : vector<1x8xf32>
    %cst_27 = arith.constant 5.000000e-01 : f32
    %95 = arith.mulf %cst_27, %65 : f32
    %96 = arith.subf %59, %95 : f32
    %cst_28 = arith.constant 5.000000e-01 : f32
    %97 = arith.mulf %cst_28, %68 : f32
    %98 = arith.subf %62, %97 : f32
    %cst_29 = arith.constant 5.000000e-01 : f32
    %99 = arith.mulf %cst_29, %65 : f32
    %100 = arith.addf %59, %99 : f32
    %cst_30 = arith.constant 5.000000e-01 : f32
    %101 = arith.mulf %cst_30, %68 : f32
    %102 = arith.addf %62, %101 : f32
    %103 = arith.subf %100, %96 : f32
    %104 = arith.subf %102, %98 : f32
    %105 = arith.mulf %103, %104 : f32
    %106 = vector.broadcast %100 : f32 to vector<1x8xf32>
    %107 = arith.minimumf %29, %106 : vector<1x8xf32>
    %108 = vector.broadcast %96 : f32 to vector<1x8xf32>
    %109 = arith.maximumf %23, %108 : vector<1x8xf32>
    %110 = arith.subf %107, %109 : vector<1x8xf32>
    %cst_31 = arith.constant 0.000000e+00 : f32
    %111 = vector.broadcast %cst_31 : f32 to vector<1x8xf32>
    %112 = arith.maximumf %110, %111 : vector<1x8xf32>
    %113 = vector.broadcast %102 : f32 to vector<1x8xf32>
    %114 = arith.minimumf %32, %113 : vector<1x8xf32>
    %115 = vector.broadcast %98 : f32 to vector<1x8xf32>
    %116 = arith.maximumf %26, %115 : vector<1x8xf32>
    %117 = arith.subf %114, %116 : vector<1x8xf32>
    %cst_32 = arith.constant 0.000000e+00 : f32
    %118 = vector.broadcast %cst_32 : f32 to vector<1x8xf32>
    %119 = arith.maximumf %117, %118 : vector<1x8xf32>
    %120 = arith.mulf %112, %119 : vector<1x8xf32>
    %121 = vector.broadcast %105 : f32 to vector<1x8xf32>
    %122 = arith.addf %35, %121 : vector<1x8xf32>
    %123 = arith.subf %122, %120 : vector<1x8xf32>
    %cst_33 = arith.constant 9.99999996E-13 : f32
    %124 = vector.broadcast %cst_33 : f32 to vector<1x8xf32>
    %125 = arith.maximumf %123, %124 : vector<1x8xf32>
    %126 = vector.broadcast %100 : f32 to vector<1x8xf32>
    %127 = arith.maximumf %29, %126 : vector<1x8xf32>
    %128 = vector.broadcast %96 : f32 to vector<1x8xf32>
    %129 = arith.minimumf %23, %128 : vector<1x8xf32>
    %130 = arith.subf %127, %129 : vector<1x8xf32>
    %131 = vector.broadcast %102 : f32 to vector<1x8xf32>
    %132 = arith.maximumf %32, %131 : vector<1x8xf32>
    %133 = vector.broadcast %98 : f32 to vector<1x8xf32>
    %134 = arith.minimumf %26, %133 : vector<1x8xf32>
    %135 = arith.subf %132, %134 : vector<1x8xf32>
    %136 = arith.mulf %130, %135 : vector<1x8xf32>
    %cst_34 = arith.constant 9.99999996E-13 : f32
    %137 = vector.broadcast %cst_34 : f32 to vector<1x8xf32>
    %138 = arith.maximumf %136, %137 : vector<1x8xf32>
    %139 = arith.divf %120, %125 : vector<1x8xf32>
    %140 = arith.subf %138, %125 : vector<1x8xf32>
    %141 = arith.divf %140, %138 : vector<1x8xf32>
    %142 = arith.subf %139, %141 : vector<1x8xf32>
    %cst_35 = arith.constant 0.000000e+00 : f32
    %143 = vector.broadcast %cst_35 : f32 to vector<1x8xf32>
    %144 = arith.subf %143, %79 : vector<1x8xf32>
    %cst_36 = arith.constant 5.000000e+00 : f32
    %145 = vector.broadcast %cst_36 : f32 to vector<1x8xf32>
    %146 = arith.mulf %145, %94 : vector<1x8xf32>
    %147 = arith.addf %144, %146 : vector<1x8xf32>
    %cst_37 = arith.constant 2.000000e+00 : f32
    %148 = vector.broadcast %cst_37 : f32 to vector<1x8xf32>
    %149 = arith.mulf %148, %142 : vector<1x8xf32>
    %150 = arith.subf %147, %149 : vector<1x8xf32>
    %151 = arith.addf %150, %48 : vector<1x8xf32>
    %cst_38 = arith.constant dense<0x7F800000> : vector<1xf32>
    %152 = vector.multi_reduction <minimumf>, %151, %cst_38 [1] : vector<1x8xf32> to vector<1xf32>
    %153 = vector.shape_cast %152 : vector<1xf32> to vector<1x1xf32>
    %154 = vector.broadcast %153 : vector<1x1xf32> to vector<1x8xf32>
    %155 = arith.cmpf ole, %151, %154 : vector<1x8xf32>
    %cst_39 = arith.constant 8.000000e+00 : f32
    %156 = vector.broadcast %cst_39 : f32 to vector<1x8xf32>
    %157 = arith.select %155, %1, %156 : vector<1x8xi1>, vector<1x8xf32>
    %cst_40 = arith.constant dense<0x7F800000> : vector<1xf32>
    %158 = vector.multi_reduction <minimumf>, %157, %cst_40 [1] : vector<1x8xf32> to vector<1xf32>
    %159 = vector.shape_cast %158 : vector<1xf32> to vector<1x1xf32>
    %160 = vector.broadcast %159 : vector<1x1xf32> to vector<1x8xf32>
    %161 = arith.cmpf oeq, %1, %160 : vector<1x8xf32>
    %162 = arith.extui %161 : vector<1x8xi1> to vector<1x8xi32>
    %163 = arith.sitofp %162 : vector<1x8xi32> to vector<1x8xf32>
    %164 = vector.broadcast %51 : f32 to vector<1x8xf32>
    %165 = arith.mulf %163, %164 : vector<1x8xf32>
    %cst_41 = arith.constant 1.000000e+09 : f32
    %166 = vector.broadcast %cst_41 : f32 to vector<1x8xf32>
    %167 = arith.mulf %165, %166 : vector<1x8xf32>
    %168 = arith.addf %48, %167 : vector<1x8xf32>
    %169 = arith.addf %48, %165 : vector<1x8xf32>
    %170 = arith.mulf %165, %75 : vector<1x8xf32>
    %171 = arith.addf %48, %170 : vector<1x8xf32>
    %172 = arith.sitofp %54 : i32 to f32
    %173 = vector.broadcast %172 : f32 to vector<1x8xf32>
    %174 = arith.mulf %165, %173 : vector<1x8xf32>
    %175 = arith.addf %48, %174 : vector<1x8xf32>
    %176 = vector.broadcast %59 : f32 to vector<1x8xf32>
    %177 = arith.mulf %165, %176 : vector<1x8xf32>
    %178 = arith.addf %48, %177 : vector<1x8xf32>
    %179 = vector.broadcast %62 : f32 to vector<1x8xf32>
    %180 = arith.mulf %165, %179 : vector<1x8xf32>
    %181 = arith.addf %48, %180 : vector<1x8xf32>
    %182 = vector.broadcast %65 : f32 to vector<1x8xf32>
    %183 = arith.mulf %165, %182 : vector<1x8xf32>
    %184 = arith.addf %48, %183 : vector<1x8xf32>
    %185 = vector.broadcast %68 : f32 to vector<1x8xf32>
    %186 = arith.mulf %165, %185 : vector<1x8xf32>
    %187 = arith.addf %48, %186 : vector<1x8xf32>
    %c1_i32_42 = arith.constant 1 : i32
    %188 = arith.cmpi slt, %c1_i32_42, %47 : i32
    %189 = arith.extui %188 : i1 to i32
    %190 = arith.sitofp %189 : i32 to f32
    %c0_i32_43 = arith.constant 0 : i32
    %191 = arith.addi %c0_i32_43, %c1_i32_42 : i32
    %192 = arith.index_cast %191 : i32 to index
    %193 = memref.load %arg2[%192] : memref<4xi32, #tpu.memory_space<smem>>
    %c0_i32_44 = arith.constant 0 : i32
    %194 = arith.addi %c0_i32_44, %c1_i32_42 : i32
    %c4_i32_45 = arith.constant 4 : i32
    %195 = arith.muli %194, %c4_i32_45 : i32
    %c0_i32_46 = arith.constant 0 : i32
    %196 = arith.addi %195, %c0_i32_46 : i32
    %197 = arith.index_cast %196 : i32 to index
    %198 = memref.load %arg4[%197] : memref<16xf32, #tpu.memory_space<smem>>
    %c1_i32_47 = arith.constant 1 : i32
    %199 = arith.addi %195, %c1_i32_47 : i32
    %200 = arith.index_cast %199 : i32 to index
    %201 = memref.load %arg4[%200] : memref<16xf32, #tpu.memory_space<smem>>
    %c2_i32_48 = arith.constant 2 : i32
    %202 = arith.addi %195, %c2_i32_48 : i32
    %203 = arith.index_cast %202 : i32 to index
    %204 = memref.load %arg4[%203] : memref<16xf32, #tpu.memory_space<smem>>
    %c3_i32_49 = arith.constant 3 : i32
    %205 = arith.addi %195, %c3_i32_49 : i32
    %206 = arith.index_cast %205 : i32 to index
    %207 = memref.load %arg4[%206] : memref<16xf32, #tpu.memory_space<smem>>
    %208 = vector.broadcast %193 : i32 to vector<3x8xi32>
    %209 = arith.cmpi eq, %2, %208 : vector<3x8xi32>
    %210 = arith.extui %209 : vector<3x8xi1> to vector<3x8xi32>
    %211 = arith.sitofp %210 : vector<3x8xi32> to vector<3x8xf32>
    %212 = arith.mulf %14, %211 : vector<3x8xf32>
    %cst_50 = arith.constant dense<0.000000e+00> : vector<8xf32>
    %213 = vector.multi_reduction <add>, %212, %cst_50 [0] : vector<3x8xf32> to vector<8xf32>
    %214 = vector.shape_cast %213 : vector<8xf32> to vector<1x8xf32>
    %215 = arith.mulf %40, %211 : vector<3x8xf32>
    %cst_51 = arith.constant dense<0.000000e+00> : vector<8xf32>
    %216 = vector.multi_reduction <add>, %215, %cst_51 [0] : vector<3x8xf32> to vector<8xf32>
    %217 = vector.shape_cast %216 : vector<8xf32> to vector<1x8xf32>
    %218 = arith.mulf %217, %45 : vector<1x8xf32>
    %219 = vector.broadcast %198 : f32 to vector<1x8xf32>
    %220 = arith.subf %17, %219 : vector<1x8xf32>
    %221 = math.absf %220 : vector<1x8xf32>
    %222 = vector.broadcast %201 : f32 to vector<1x8xf32>
    %223 = arith.subf %18, %222 : vector<1x8xf32>
    %224 = math.absf %223 : vector<1x8xf32>
    %225 = arith.addf %221, %224 : vector<1x8xf32>
    %226 = vector.broadcast %204 : f32 to vector<1x8xf32>
    %227 = arith.subf %19, %226 : vector<1x8xf32>
    %228 = math.absf %227 : vector<1x8xf32>
    %229 = arith.addf %225, %228 : vector<1x8xf32>
    %230 = vector.broadcast %207 : f32 to vector<1x8xf32>
    %231 = arith.subf %20, %230 : vector<1x8xf32>
    %232 = math.absf %231 : vector<1x8xf32>
    %233 = arith.addf %229, %232 : vector<1x8xf32>
    %cst_52 = arith.constant 5.000000e-01 : f32
    %234 = arith.mulf %cst_52, %204 : f32
    %235 = arith.subf %198, %234 : f32
    %cst_53 = arith.constant 5.000000e-01 : f32
    %236 = arith.mulf %cst_53, %207 : f32
    %237 = arith.subf %201, %236 : f32
    %cst_54 = arith.constant 5.000000e-01 : f32
    %238 = arith.mulf %cst_54, %204 : f32
    %239 = arith.addf %198, %238 : f32
    %cst_55 = arith.constant 5.000000e-01 : f32
    %240 = arith.mulf %cst_55, %207 : f32
    %241 = arith.addf %201, %240 : f32
    %242 = arith.subf %239, %235 : f32
    %243 = arith.subf %241, %237 : f32
    %244 = arith.mulf %242, %243 : f32
    %245 = vector.broadcast %239 : f32 to vector<1x8xf32>
    %246 = arith.minimumf %29, %245 : vector<1x8xf32>
    %247 = vector.broadcast %235 : f32 to vector<1x8xf32>
    %248 = arith.maximumf %23, %247 : vector<1x8xf32>
    %249 = arith.subf %246, %248 : vector<1x8xf32>
    %cst_56 = arith.constant 0.000000e+00 : f32
    %250 = vector.broadcast %cst_56 : f32 to vector<1x8xf32>
    %251 = arith.maximumf %249, %250 : vector<1x8xf32>
    %252 = vector.broadcast %241 : f32 to vector<1x8xf32>
    %253 = arith.minimumf %32, %252 : vector<1x8xf32>
    %254 = vector.broadcast %237 : f32 to vector<1x8xf32>
    %255 = arith.maximumf %26, %254 : vector<1x8xf32>
    %256 = arith.subf %253, %255 : vector<1x8xf32>
    %cst_57 = arith.constant 0.000000e+00 : f32
    %257 = vector.broadcast %cst_57 : f32 to vector<1x8xf32>
    %258 = arith.maximumf %256, %257 : vector<1x8xf32>
    %259 = arith.mulf %251, %258 : vector<1x8xf32>
    %260 = vector.broadcast %244 : f32 to vector<1x8xf32>
    %261 = arith.addf %35, %260 : vector<1x8xf32>
    %262 = arith.subf %261, %259 : vector<1x8xf32>
    %cst_58 = arith.constant 9.99999996E-13 : f32
    %263 = vector.broadcast %cst_58 : f32 to vector<1x8xf32>
    %264 = arith.maximumf %262, %263 : vector<1x8xf32>
    %265 = vector.broadcast %239 : f32 to vector<1x8xf32>
    %266 = arith.maximumf %29, %265 : vector<1x8xf32>
    %267 = vector.broadcast %235 : f32 to vector<1x8xf32>
    %268 = arith.minimumf %23, %267 : vector<1x8xf32>
    %269 = arith.subf %266, %268 : vector<1x8xf32>
    %270 = vector.broadcast %241 : f32 to vector<1x8xf32>
    %271 = arith.maximumf %32, %270 : vector<1x8xf32>
    %272 = vector.broadcast %237 : f32 to vector<1x8xf32>
    %273 = arith.minimumf %26, %272 : vector<1x8xf32>
    %274 = arith.subf %271, %273 : vector<1x8xf32>
    %275 = arith.mulf %269, %274 : vector<1x8xf32>
    %cst_59 = arith.constant 9.99999996E-13 : f32
    %276 = vector.broadcast %cst_59 : f32 to vector<1x8xf32>
    %277 = arith.maximumf %275, %276 : vector<1x8xf32>
    %278 = arith.divf %259, %264 : vector<1x8xf32>
    %279 = arith.subf %277, %264 : vector<1x8xf32>
    %280 = arith.divf %279, %277 : vector<1x8xf32>
    %281 = arith.subf %278, %280 : vector<1x8xf32>
    %cst_60 = arith.constant 0.000000e+00 : f32
    %282 = vector.broadcast %cst_60 : f32 to vector<1x8xf32>
    %283 = arith.subf %282, %218 : vector<1x8xf32>
    %cst_61 = arith.constant 5.000000e+00 : f32
    %284 = vector.broadcast %cst_61 : f32 to vector<1x8xf32>
    %285 = arith.mulf %284, %233 : vector<1x8xf32>
    %286 = arith.addf %283, %285 : vector<1x8xf32>
    %cst_62 = arith.constant 2.000000e+00 : f32
    %287 = vector.broadcast %cst_62 : f32 to vector<1x8xf32>
    %288 = arith.mulf %287, %281 : vector<1x8xf32>
    %289 = arith.subf %286, %288 : vector<1x8xf32>
    %290 = arith.addf %289, %168 : vector<1x8xf32>
    %cst_63 = arith.constant dense<0x7F800000> : vector<1xf32>
    %291 = vector.multi_reduction <minimumf>, %290, %cst_63 [1] : vector<1x8xf32> to vector<1xf32>
    %292 = vector.shape_cast %291 : vector<1xf32> to vector<1x1xf32>
    %293 = vector.broadcast %292 : vector<1x1xf32> to vector<1x8xf32>
    %294 = arith.cmpf ole, %290, %293 : vector<1x8xf32>
    %cst_64 = arith.constant 8.000000e+00 : f32
    %295 = vector.broadcast %cst_64 : f32 to vector<1x8xf32>
    %296 = arith.select %294, %1, %295 : vector<1x8xi1>, vector<1x8xf32>
    %cst_65 = arith.constant dense<0x7F800000> : vector<1xf32>
    %297 = vector.multi_reduction <minimumf>, %296, %cst_65 [1] : vector<1x8xf32> to vector<1xf32>
    %298 = vector.shape_cast %297 : vector<1xf32> to vector<1x1xf32>
    %299 = vector.broadcast %298 : vector<1x1xf32> to vector<1x8xf32>
    %300 = arith.cmpf oeq, %1, %299 : vector<1x8xf32>
    %301 = arith.extui %300 : vector<1x8xi1> to vector<1x8xi32>
    %302 = arith.sitofp %301 : vector<1x8xi32> to vector<1x8xf32>
    %303 = vector.broadcast %190 : f32 to vector<1x8xf32>
    %304 = arith.mulf %302, %303 : vector<1x8xf32>
    %cst_66 = arith.constant 1.000000e+09 : f32
    %305 = vector.broadcast %cst_66 : f32 to vector<1x8xf32>
    %306 = arith.mulf %304, %305 : vector<1x8xf32>
    %307 = arith.addf %168, %306 : vector<1x8xf32>
    %308 = arith.addf %169, %304 : vector<1x8xf32>
    %309 = arith.mulf %304, %214 : vector<1x8xf32>
    %310 = arith.addf %171, %309 : vector<1x8xf32>
    %311 = arith.sitofp %193 : i32 to f32
    %312 = vector.broadcast %311 : f32 to vector<1x8xf32>
    %313 = arith.mulf %304, %312 : vector<1x8xf32>
    %314 = arith.addf %175, %313 : vector<1x8xf32>
    %315 = vector.broadcast %198 : f32 to vector<1x8xf32>
    %316 = arith.mulf %304, %315 : vector<1x8xf32>
    %317 = arith.addf %178, %316 : vector<1x8xf32>
    %318 = vector.broadcast %201 : f32 to vector<1x8xf32>
    %319 = arith.mulf %304, %318 : vector<1x8xf32>
    %320 = arith.addf %181, %319 : vector<1x8xf32>
    %321 = vector.broadcast %204 : f32 to vector<1x8xf32>
    %322 = arith.mulf %304, %321 : vector<1x8xf32>
    %323 = arith.addf %184, %322 : vector<1x8xf32>
    %324 = vector.broadcast %207 : f32 to vector<1x8xf32>
    %325 = arith.mulf %304, %324 : vector<1x8xf32>
    %326 = arith.addf %187, %325 : vector<1x8xf32>
    %c2_i32_67 = arith.constant 2 : i32
    %327 = vector.extract_strided_slice %14 {offsets = [2, 0], sizes = [1, 8], strides = [1, 1]} : vector<3x8xf32> to vector<1x8xf32>
    %328 = arith.mulf %308, %310 : vector<1x8xf32>
    %cst_68 = arith.constant 1.000000e+00 : f32
    %329 = vector.broadcast %cst_68 : f32 to vector<1x8xf32>
    %330 = arith.subf %329, %308 : vector<1x8xf32>
    %331 = arith.mulf %330, %327 : vector<1x8xf32>
    %332 = arith.addf %328, %331 : vector<1x8xf32>
    %cst_69 = arith.constant 1.000000e+00 : f32
    %333 = vector.broadcast %cst_69 : f32 to vector<1x8xf32>
    %334 = arith.subf %333, %308 : vector<1x8xf32>
    %cst_70 = arith.constant 1.000000e-01 : f32
    %335 = vector.broadcast %cst_70 : f32 to vector<1x8xf32>
    %336 = arith.mulf %334, %335 : vector<1x8xf32>
    %337 = arith.addf %308, %336 : vector<1x8xf32>
    %338 = arith.subf %44, %332 : vector<1x8xf32>
    %339 = arith.mulf %337, %338 : vector<1x8xf32>
    %cst_71 = arith.constant dense<0.000000e+00> : vector<1xf32>
    %340 = vector.multi_reduction <add>, %339, %cst_71 [1] : vector<1x8xf32> to vector<1xf32>
    %341 = vector.shape_cast %340 : vector<1xf32> to vector<1x1xf32>
    %342 = arith.addf %5, %341 : vector<1x1xf32>
    %cst_72 = arith.constant dense<0.000000e+00> : vector<1xf32>
    %343 = vector.multi_reduction <add>, %337, %cst_72 [1] : vector<1x8xf32> to vector<1xf32>
    %344 = vector.shape_cast %343 : vector<1xf32> to vector<1x1xf32>
    %345 = arith.addf %6, %344 : vector<1x1xf32>
    %346 = vector.broadcast %37 : vector<1x8xf32> to vector<3x8xf32>
    %347 = arith.cmpf oge, %14, %346 : vector<3x8xf32>
    %cst_73 = arith.constant 3.000000e+00 : f32
    %348 = vector.broadcast %cst_73 : f32 to vector<3x8xf32>
    %349 = arith.select %347, %3, %348 : vector<3x8xi1>, vector<3x8xf32>
    %cst_74 = arith.constant dense<0x7F800000> : vector<8xf32>
    %350 = vector.multi_reduction <minimumf>, %349, %cst_74 [0] : vector<3x8xf32> to vector<8xf32>
    %351 = vector.shape_cast %350 : vector<8xf32> to vector<1x8xf32>
    %352 = arith.cmpf oeq, %351, %314 : vector<1x8xf32>
    %353 = arith.extui %352 : vector<1x8xi1> to vector<1x8xi32>
    %354 = arith.sitofp %353 : vector<1x8xi32> to vector<1x8xf32>
    %355 = arith.mulf %354, %308 : vector<1x8xf32>
    %cst_75 = arith.constant dense<0.000000e+00> : vector<1xf32>
    %356 = vector.multi_reduction <add>, %355, %cst_75 [1] : vector<1x8xf32> to vector<1xf32>
    %357 = vector.shape_cast %356 : vector<1xf32> to vector<1x1xf32>
    %358 = arith.addf %9, %357 : vector<1x1xf32>
    %cst_76 = arith.constant dense<0.000000e+00> : vector<1xf32>
    %359 = vector.multi_reduction <add>, %308, %cst_76 [1] : vector<1x8xf32> to vector<1xf32>
    %360 = vector.shape_cast %359 : vector<1xf32> to vector<1x1xf32>
    %361 = arith.addf %10, %360 : vector<1x1xf32>
    %c0_77 = arith.constant 0 : index
    %c0_78 = arith.constant 0 : index
    %c0_79 = arith.constant 0 : index
    %362 = vector.load %arg7[%c0_77, %c0_78, %c0_79] : memref<1x2x2xf32, #tpu.memory_space<vmem>>, vector<1x1x2xf32>
    %363 = vector.shape_cast %362 : vector<1x1x2xf32> to vector<1x2xf32>
    %cst_80 = arith.constant dense<0xFF800000> : vector<1xf32>
    %364 = vector.multi_reduction <maximumf>, %363, %cst_80 [1] : vector<1x2xf32> to vector<1xf32>
    %365 = vector.shape_cast %364 : vector<1xf32> to vector<1x1xf32>
    %366 = vector.broadcast %365 : vector<1x1xf32> to vector<1x2xf32>
    %367 = arith.subf %363, %366 : vector<1x2xf32>
    %368 = math.exp %367 : vector<1x2xf32>
    %cst_81 = arith.constant dense<0.000000e+00> : vector<1xf32>
    %369 = vector.multi_reduction <add>, %368, %cst_81 [1] : vector<1x2xf32> to vector<1xf32>
    %370 = vector.shape_cast %369 : vector<1xf32> to vector<1x1xf32>
    %371 = math.log %370 : vector<1x1xf32>
    %372 = arith.addf %365, %371 : vector<1x1xf32>
    %c0_82 = arith.constant 0 : index
    %373 = memref.load %arg3[%c0_82] : memref<2xi32, #tpu.memory_space<smem>>
    %374 = vector.broadcast %373 : i32 to vector<1x2xi32>
    %375 = arith.cmpi eq, %4, %374 : vector<1x2xi32>
    %376 = arith.extui %375 : vector<1x2xi1> to vector<1x2xi32>
    %377 = arith.sitofp %376 : vector<1x2xi32> to vector<1x2xf32>
    %378 = arith.addf %7, %372 : vector<1x1xf32>
    %379 = arith.mulf %363, %377 : vector<1x2xf32>
    %cst_83 = arith.constant dense<0.000000e+00> : vector<1xf32>
    %380 = vector.multi_reduction <add>, %379, %cst_83 [1] : vector<1x2xf32> to vector<1xf32>
    %381 = vector.shape_cast %380 : vector<1xf32> to vector<1x1xf32>
    %382 = arith.subf %378, %381 : vector<1x1xf32>
    %cst_84 = arith.constant 1.000000e+00 : f32
    %383 = vector.broadcast %cst_84 : f32 to vector<1x1xf32>
    %384 = arith.addf %8, %383 : vector<1x1xf32>
    %385 = arith.subf %17, %317 : vector<1x8xf32>
    %386 = math.absf %385 : vector<1x8xf32>
    %387 = arith.subf %18, %320 : vector<1x8xf32>
    %388 = math.absf %387 : vector<1x8xf32>
    %389 = arith.addf %386, %388 : vector<1x8xf32>
    %390 = arith.subf %19, %323 : vector<1x8xf32>
    %391 = math.absf %390 : vector<1x8xf32>
    %392 = arith.addf %389, %391 : vector<1x8xf32>
    %393 = arith.subf %20, %326 : vector<1x8xf32>
    %394 = math.absf %393 : vector<1x8xf32>
    %395 = arith.addf %392, %394 : vector<1x8xf32>
    %396 = arith.mulf %395, %308 : vector<1x8xf32>
    %cst_85 = arith.constant dense<0.000000e+00> : vector<1xf32>
    %397 = vector.multi_reduction <add>, %396, %cst_85 [1] : vector<1x8xf32> to vector<1xf32>
    %398 = vector.shape_cast %397 : vector<1xf32> to vector<1x1xf32>
    %399 = arith.addf %11, %398 : vector<1x1xf32>
    %cst_86 = arith.constant 5.000000e-01 : f32
    %400 = vector.broadcast %cst_86 : f32 to vector<1x8xf32>
    %401 = arith.mulf %400, %323 : vector<1x8xf32>
    %402 = arith.subf %317, %401 : vector<1x8xf32>
    %cst_87 = arith.constant 5.000000e-01 : f32
    %403 = vector.broadcast %cst_87 : f32 to vector<1x8xf32>
    %404 = arith.mulf %403, %326 : vector<1x8xf32>
    %405 = arith.subf %320, %404 : vector<1x8xf32>
    %cst_88 = arith.constant 5.000000e-01 : f32
    %406 = vector.broadcast %cst_88 : f32 to vector<1x8xf32>
    %407 = arith.mulf %406, %323 : vector<1x8xf32>
    %408 = arith.addf %317, %407 : vector<1x8xf32>
    %cst_89 = arith.constant 5.000000e-01 : f32
    %409 = vector.broadcast %cst_89 : f32 to vector<1x8xf32>
    %410 = arith.mulf %409, %326 : vector<1x8xf32>
    %411 = arith.addf %320, %410 : vector<1x8xf32>
    %412 = arith.subf %408, %402 : vector<1x8xf32>
    %413 = arith.subf %411, %405 : vector<1x8xf32>
    %414 = arith.mulf %412, %413 : vector<1x8xf32>
    %415 = arith.minimumf %29, %408 : vector<1x8xf32>
    %416 = arith.maximumf %23, %402 : vector<1x8xf32>
    %417 = arith.subf %415, %416 : vector<1x8xf32>
    %cst_90 = arith.constant 0.000000e+00 : f32
    %418 = vector.broadcast %cst_90 : f32 to vector<1x8xf32>
    %419 = arith.maximumf %417, %418 : vector<1x8xf32>
    %420 = arith.minimumf %32, %411 : vector<1x8xf32>
    %421 = arith.maximumf %26, %405 : vector<1x8xf32>
    %422 = arith.subf %420, %421 : vector<1x8xf32>
    %cst_91 = arith.constant 0.000000e+00 : f32
    %423 = vector.broadcast %cst_91 : f32 to vector<1x8xf32>
    %424 = arith.maximumf %422, %423 : vector<1x8xf32>
    %425 = arith.mulf %419, %424 : vector<1x8xf32>
    %426 = arith.addf %35, %414 : vector<1x8xf32>
    %427 = arith.subf %426, %425 : vector<1x8xf32>
    %428 = arith.maximumf %29, %408 : vector<1x8xf32>
    %429 = arith.minimumf %23, %402 : vector<1x8xf32>
    %430 = arith.subf %428, %429 : vector<1x8xf32>
    %431 = arith.maximumf %32, %411 : vector<1x8xf32>
    %432 = arith.minimumf %26, %405 : vector<1x8xf32>
    %433 = arith.subf %431, %432 : vector<1x8xf32>
    %434 = arith.mulf %430, %433 : vector<1x8xf32>
    %cst_92 = arith.constant 0.000000e+00 : f32
    %435 = vector.broadcast %cst_92 : f32 to vector<1x8xf32>
    %436 = arith.cmpf ogt, %308, %435 : vector<1x8xf32>
    %cst_93 = arith.constant 9.99999996E-13 : f32
    %437 = vector.broadcast %cst_93 : f32 to vector<1x8xf32>
    %438 = arith.maximumf %427, %437 : vector<1x8xf32>
    %cst_94 = arith.constant 1.000000e+00 : f32
    %439 = vector.broadcast %cst_94 : f32 to vector<1x8xf32>
    %440 = arith.select %436, %438, %439 : vector<1x8xi1>, vector<1x8xf32>
    %cst_95 = arith.constant 0.000000e+00 : f32
    %441 = vector.broadcast %cst_95 : f32 to vector<1x8xf32>
    %442 = arith.cmpf ogt, %308, %441 : vector<1x8xf32>
    %cst_96 = arith.constant 9.99999996E-13 : f32
    %443 = vector.broadcast %cst_96 : f32 to vector<1x8xf32>
    %444 = arith.maximumf %434, %443 : vector<1x8xf32>
    %cst_97 = arith.constant 1.000000e+00 : f32
    %445 = vector.broadcast %cst_97 : f32 to vector<1x8xf32>
    %446 = arith.select %442, %444, %445 : vector<1x8xi1>, vector<1x8xf32>
    %447 = arith.divf %425, %440 : vector<1x8xf32>
    %448 = arith.subf %434, %427 : vector<1x8xf32>
    %449 = arith.divf %448, %446 : vector<1x8xf32>
    %450 = arith.subf %447, %449 : vector<1x8xf32>
    %cst_98 = arith.constant 1.000000e+00 : f32
    %451 = vector.broadcast %cst_98 : f32 to vector<1x8xf32>
    %452 = arith.subf %451, %450 : vector<1x8xf32>
    %453 = arith.mulf %452, %308 : vector<1x8xf32>
    %cst_99 = arith.constant dense<0.000000e+00> : vector<1xf32>
    %454 = vector.multi_reduction <add>, %453, %cst_99 [1] : vector<1x8xf32> to vector<1xf32>
    %455 = vector.shape_cast %454 : vector<1xf32> to vector<1x1xf32>
    %456 = arith.addf %12, %455 : vector<1x1xf32>
    %c0_100 = arith.constant 0 : index
    %c1 = arith.constant 1 : index
    %c0_101 = arith.constant 0 : index
    %c0_102 = arith.constant 0 : index
    %457 = vector.load %arg5[%c0_100, %c1, %c0_101, %c0_102] : memref<1x2x3x8xf32, #tpu.memory_space<vmem>>, vector<1x1x3x8xf32>
    %458 = vector.shape_cast %457 : vector<1x1x3x8xf32> to vector<3x8xf32>
    %c0_103 = arith.constant 0 : index
    %c1_104 = arith.constant 1 : index
    %c0_105 = arith.constant 0 : index
    %c0_106 = arith.constant 0 : index
    %459 = vector.load %arg6[%c0_103, %c1_104, %c0_105, %c0_106] : memref<1x2x4x8xf32, #tpu.memory_space<vmem>>, vector<1x1x4x8xf32>
    %460 = vector.shape_cast %459 : vector<1x1x4x8xf32> to vector<4x8xf32>
    %461 = vector.extract_strided_slice %460 {offsets = [0, 0], sizes = [1, 8], strides = [1, 1]} : vector<4x8xf32> to vector<1x8xf32>
    %462 = vector.extract_strided_slice %460 {offsets = [1, 0], sizes = [1, 8], strides = [1, 1]} : vector<4x8xf32> to vector<1x8xf32>
    %463 = vector.extract_strided_slice %460 {offsets = [2, 0], sizes = [1, 8], strides = [1, 1]} : vector<4x8xf32> to vector<1x8xf32>
    %464 = vector.extract_strided_slice %460 {offsets = [3, 0], sizes = [1, 8], strides = [1, 1]} : vector<4x8xf32> to vector<1x8xf32>
    %cst_107 = arith.constant 5.000000e-01 : f32
    %465 = vector.broadcast %cst_107 : f32 to vector<1x8xf32>
    %466 = arith.mulf %465, %463 : vector<1x8xf32>
    %467 = arith.subf %461, %466 : vector<1x8xf32>
    %cst_108 = arith.constant 5.000000e-01 : f32
    %468 = vector.broadcast %cst_108 : f32 to vector<1x8xf32>
    %469 = arith.mulf %468, %464 : vector<1x8xf32>
    %470 = arith.subf %462, %469 : vector<1x8xf32>
    %cst_109 = arith.constant 5.000000e-01 : f32
    %471 = vector.broadcast %cst_109 : f32 to vector<1x8xf32>
    %472 = arith.mulf %471, %463 : vector<1x8xf32>
    %473 = arith.addf %461, %472 : vector<1x8xf32>
    %cst_110 = arith.constant 5.000000e-01 : f32
    %474 = vector.broadcast %cst_110 : f32 to vector<1x8xf32>
    %475 = arith.mulf %474, %464 : vector<1x8xf32>
    %476 = arith.addf %462, %475 : vector<1x8xf32>
    %477 = arith.subf %473, %467 : vector<1x8xf32>
    %478 = arith.subf %476, %470 : vector<1x8xf32>
    %479 = arith.mulf %477, %478 : vector<1x8xf32>
    %cst_111 = arith.constant dense<0xFF800000> : vector<8xf32>
    %480 = vector.multi_reduction <maximumf>, %458, %cst_111 [0] : vector<3x8xf32> to vector<8xf32>
    %481 = vector.shape_cast %480 : vector<8xf32> to vector<1x8xf32>
    %482 = vector.broadcast %481 : vector<1x8xf32> to vector<3x8xf32>
    %483 = arith.subf %458, %482 : vector<3x8xf32>
    %484 = math.exp %483 : vector<3x8xf32>
    %cst_112 = arith.constant dense<0.000000e+00> : vector<8xf32>
    %485 = vector.multi_reduction <add>, %484, %cst_112 [0] : vector<3x8xf32> to vector<8xf32>
    %486 = vector.shape_cast %485 : vector<8xf32> to vector<1x8xf32>
    %487 = math.log %486 : vector<1x8xf32>
    %488 = arith.addf %481, %487 : vector<1x8xf32>
    %489 = tpu.reciprocal %486 {approx = true} : vector<1x8xf32> -> vector<1x8xf32>
    %c1_113 = arith.constant 1 : index
    %490 = memref.load %arg1[%c1_113] : memref<2xi32, #tpu.memory_space<smem>>
    %c8_i32_114 = arith.constant 8 : i32
    %491 = arith.minsi %490, %c8_i32_114 : i32
    %cst_115 = arith.constant 0.000000e+00 : f32
    %492 = vector.broadcast %cst_115 : f32 to vector<1x8xf32>
    %c0_i32_116 = arith.constant 0 : i32
    %493 = arith.cmpi slt, %c0_i32_116, %491 : i32
    %494 = arith.extui %493 : i1 to i32
    %495 = arith.sitofp %494 : i32 to f32
    %c2_i32_117 = arith.constant 2 : i32
    %496 = arith.addi %c2_i32_117, %c0_i32_116 : i32
    %497 = arith.index_cast %496 : i32 to index
    %498 = memref.load %arg2[%497] : memref<4xi32, #tpu.memory_space<smem>>
    %c2_i32_118 = arith.constant 2 : i32
    %499 = arith.addi %c2_i32_118, %c0_i32_116 : i32
    %c4_i32_119 = arith.constant 4 : i32
    %500 = arith.muli %499, %c4_i32_119 : i32
    %c0_i32_120 = arith.constant 0 : i32
    %501 = arith.addi %500, %c0_i32_120 : i32
    %502 = arith.index_cast %501 : i32 to index
    %503 = memref.load %arg4[%502] : memref<16xf32, #tpu.memory_space<smem>>
    %c1_i32_121 = arith.constant 1 : i32
    %504 = arith.addi %500, %c1_i32_121 : i32
    %505 = arith.index_cast %504 : i32 to index
    %506 = memref.load %arg4[%505] : memref<16xf32, #tpu.memory_space<smem>>
    %c2_i32_122 = arith.constant 2 : i32
    %507 = arith.addi %500, %c2_i32_122 : i32
    %508 = arith.index_cast %507 : i32 to index
    %509 = memref.load %arg4[%508] : memref<16xf32, #tpu.memory_space<smem>>
    %c3_i32_123 = arith.constant 3 : i32
    %510 = arith.addi %500, %c3_i32_123 : i32
    %511 = arith.index_cast %510 : i32 to index
    %512 = memref.load %arg4[%511] : memref<16xf32, #tpu.memory_space<smem>>
    %513 = vector.broadcast %498 : i32 to vector<3x8xi32>
    %514 = arith.cmpi eq, %2, %513 : vector<3x8xi32>
    %515 = arith.extui %514 : vector<3x8xi1> to vector<3x8xi32>
    %516 = arith.sitofp %515 : vector<3x8xi32> to vector<3x8xf32>
    %517 = arith.mulf %458, %516 : vector<3x8xf32>
    %cst_124 = arith.constant dense<0.000000e+00> : vector<8xf32>
    %518 = vector.multi_reduction <add>, %517, %cst_124 [0] : vector<3x8xf32> to vector<8xf32>
    %519 = vector.shape_cast %518 : vector<8xf32> to vector<1x8xf32>
    %520 = arith.mulf %484, %516 : vector<3x8xf32>
    %cst_125 = arith.constant dense<0.000000e+00> : vector<8xf32>
    %521 = vector.multi_reduction <add>, %520, %cst_125 [0] : vector<3x8xf32> to vector<8xf32>
    %522 = vector.shape_cast %521 : vector<8xf32> to vector<1x8xf32>
    %523 = arith.mulf %522, %489 : vector<1x8xf32>
    %524 = vector.broadcast %503 : f32 to vector<1x8xf32>
    %525 = arith.subf %461, %524 : vector<1x8xf32>
    %526 = math.absf %525 : vector<1x8xf32>
    %527 = vector.broadcast %506 : f32 to vector<1x8xf32>
    %528 = arith.subf %462, %527 : vector<1x8xf32>
    %529 = math.absf %528 : vector<1x8xf32>
    %530 = arith.addf %526, %529 : vector<1x8xf32>
    %531 = vector.broadcast %509 : f32 to vector<1x8xf32>
    %532 = arith.subf %463, %531 : vector<1x8xf32>
    %533 = math.absf %532 : vector<1x8xf32>
    %534 = arith.addf %530, %533 : vector<1x8xf32>
    %535 = vector.broadcast %512 : f32 to vector<1x8xf32>
    %536 = arith.subf %464, %535 : vector<1x8xf32>
    %537 = math.absf %536 : vector<1x8xf32>
    %538 = arith.addf %534, %537 : vector<1x8xf32>
    %cst_126 = arith.constant 5.000000e-01 : f32
    %539 = arith.mulf %cst_126, %509 : f32
    %540 = arith.subf %503, %539 : f32
    %cst_127 = arith.constant 5.000000e-01 : f32
    %541 = arith.mulf %cst_127, %512 : f32
    %542 = arith.subf %506, %541 : f32
    %cst_128 = arith.constant 5.000000e-01 : f32
    %543 = arith.mulf %cst_128, %509 : f32
    %544 = arith.addf %503, %543 : f32
    %cst_129 = arith.constant 5.000000e-01 : f32
    %545 = arith.mulf %cst_129, %512 : f32
    %546 = arith.addf %506, %545 : f32
    %547 = arith.subf %544, %540 : f32
    %548 = arith.subf %546, %542 : f32
    %549 = arith.mulf %547, %548 : f32
    %550 = vector.broadcast %544 : f32 to vector<1x8xf32>
    %551 = arith.minimumf %473, %550 : vector<1x8xf32>
    %552 = vector.broadcast %540 : f32 to vector<1x8xf32>
    %553 = arith.maximumf %467, %552 : vector<1x8xf32>
    %554 = arith.subf %551, %553 : vector<1x8xf32>
    %cst_130 = arith.constant 0.000000e+00 : f32
    %555 = vector.broadcast %cst_130 : f32 to vector<1x8xf32>
    %556 = arith.maximumf %554, %555 : vector<1x8xf32>
    %557 = vector.broadcast %546 : f32 to vector<1x8xf32>
    %558 = arith.minimumf %476, %557 : vector<1x8xf32>
    %559 = vector.broadcast %542 : f32 to vector<1x8xf32>
    %560 = arith.maximumf %470, %559 : vector<1x8xf32>
    %561 = arith.subf %558, %560 : vector<1x8xf32>
    %cst_131 = arith.constant 0.000000e+00 : f32
    %562 = vector.broadcast %cst_131 : f32 to vector<1x8xf32>
    %563 = arith.maximumf %561, %562 : vector<1x8xf32>
    %564 = arith.mulf %556, %563 : vector<1x8xf32>
    %565 = vector.broadcast %549 : f32 to vector<1x8xf32>
    %566 = arith.addf %479, %565 : vector<1x8xf32>
    %567 = arith.subf %566, %564 : vector<1x8xf32>
    %cst_132 = arith.constant 9.99999996E-13 : f32
    %568 = vector.broadcast %cst_132 : f32 to vector<1x8xf32>
    %569 = arith.maximumf %567, %568 : vector<1x8xf32>
    %570 = vector.broadcast %544 : f32 to vector<1x8xf32>
    %571 = arith.maximumf %473, %570 : vector<1x8xf32>
    %572 = vector.broadcast %540 : f32 to vector<1x8xf32>
    %573 = arith.minimumf %467, %572 : vector<1x8xf32>
    %574 = arith.subf %571, %573 : vector<1x8xf32>
    %575 = vector.broadcast %546 : f32 to vector<1x8xf32>
    %576 = arith.maximumf %476, %575 : vector<1x8xf32>
    %577 = vector.broadcast %542 : f32 to vector<1x8xf32>
    %578 = arith.minimumf %470, %577 : vector<1x8xf32>
    %579 = arith.subf %576, %578 : vector<1x8xf32>
    %580 = arith.mulf %574, %579 : vector<1x8xf32>
    %cst_133 = arith.constant 9.99999996E-13 : f32
    %581 = vector.broadcast %cst_133 : f32 to vector<1x8xf32>
    %582 = arith.maximumf %580, %581 : vector<1x8xf32>
    %583 = arith.divf %564, %569 : vector<1x8xf32>
    %584 = arith.subf %582, %569 : vector<1x8xf32>
    %585 = arith.divf %584, %582 : vector<1x8xf32>
    %586 = arith.subf %583, %585 : vector<1x8xf32>
    %cst_134 = arith.constant 0.000000e+00 : f32
    %587 = vector.broadcast %cst_134 : f32 to vector<1x8xf32>
    %588 = arith.subf %587, %523 : vector<1x8xf32>
    %cst_135 = arith.constant 5.000000e+00 : f32
    %589 = vector.broadcast %cst_135 : f32 to vector<1x8xf32>
    %590 = arith.mulf %589, %538 : vector<1x8xf32>
    %591 = arith.addf %588, %590 : vector<1x8xf32>
    %cst_136 = arith.constant 2.000000e+00 : f32
    %592 = vector.broadcast %cst_136 : f32 to vector<1x8xf32>
    %593 = arith.mulf %592, %586 : vector<1x8xf32>
    %594 = arith.subf %591, %593 : vector<1x8xf32>
    %595 = arith.addf %594, %492 : vector<1x8xf32>
    %cst_137 = arith.constant dense<0x7F800000> : vector<1xf32>
    %596 = vector.multi_reduction <minimumf>, %595, %cst_137 [1] : vector<1x8xf32> to vector<1xf32>
    %597 = vector.shape_cast %596 : vector<1xf32> to vector<1x1xf32>
    %598 = vector.broadcast %597 : vector<1x1xf32> to vector<1x8xf32>
    %599 = arith.cmpf ole, %595, %598 : vector<1x8xf32>
    %cst_138 = arith.constant 8.000000e+00 : f32
    %600 = vector.broadcast %cst_138 : f32 to vector<1x8xf32>
    %601 = arith.select %599, %1, %600 : vector<1x8xi1>, vector<1x8xf32>
    %cst_139 = arith.constant dense<0x7F800000> : vector<1xf32>
    %602 = vector.multi_reduction <minimumf>, %601, %cst_139 [1] : vector<1x8xf32> to vector<1xf32>
    %603 = vector.shape_cast %602 : vector<1xf32> to vector<1x1xf32>
    %604 = vector.broadcast %603 : vector<1x1xf32> to vector<1x8xf32>
    %605 = arith.cmpf oeq, %1, %604 : vector<1x8xf32>
    %606 = arith.extui %605 : vector<1x8xi1> to vector<1x8xi32>
    %607 = arith.sitofp %606 : vector<1x8xi32> to vector<1x8xf32>
    %608 = vector.broadcast %495 : f32 to vector<1x8xf32>
    %609 = arith.mulf %607, %608 : vector<1x8xf32>
    %cst_140 = arith.constant 1.000000e+09 : f32
    %610 = vector.broadcast %cst_140 : f32 to vector<1x8xf32>
    %611 = arith.mulf %609, %610 : vector<1x8xf32>
    %612 = arith.addf %492, %611 : vector<1x8xf32>
    %613 = arith.addf %492, %609 : vector<1x8xf32>
    %614 = arith.mulf %609, %519 : vector<1x8xf32>
    %615 = arith.addf %492, %614 : vector<1x8xf32>
    %616 = arith.sitofp %498 : i32 to f32
    %617 = vector.broadcast %616 : f32 to vector<1x8xf32>
    %618 = arith.mulf %609, %617 : vector<1x8xf32>
    %619 = arith.addf %492, %618 : vector<1x8xf32>
    %620 = vector.broadcast %503 : f32 to vector<1x8xf32>
    %621 = arith.mulf %609, %620 : vector<1x8xf32>
    %622 = arith.addf %492, %621 : vector<1x8xf32>
    %623 = vector.broadcast %506 : f32 to vector<1x8xf32>
    %624 = arith.mulf %609, %623 : vector<1x8xf32>
    %625 = arith.addf %492, %624 : vector<1x8xf32>
    %626 = vector.broadcast %509 : f32 to vector<1x8xf32>
    %627 = arith.mulf %609, %626 : vector<1x8xf32>
    %628 = arith.addf %492, %627 : vector<1x8xf32>
    %629 = vector.broadcast %512 : f32 to vector<1x8xf32>
    %630 = arith.mulf %609, %629 : vector<1x8xf32>
    %631 = arith.addf %492, %630 : vector<1x8xf32>
    %c1_i32_141 = arith.constant 1 : i32
    %632 = arith.cmpi slt, %c1_i32_141, %491 : i32
    %633 = arith.extui %632 : i1 to i32
    %634 = arith.sitofp %633 : i32 to f32
    %c2_i32_142 = arith.constant 2 : i32
    %635 = arith.addi %c2_i32_142, %c1_i32_141 : i32
    %636 = arith.index_cast %635 : i32 to index
    %637 = memref.load %arg2[%636] : memref<4xi32, #tpu.memory_space<smem>>
    %c2_i32_143 = arith.constant 2 : i32
    %638 = arith.addi %c2_i32_143, %c1_i32_141 : i32
    %c4_i32_144 = arith.constant 4 : i32
    %639 = arith.muli %638, %c4_i32_144 : i32
    %c0_i32_145 = arith.constant 0 : i32
    %640 = arith.addi %639, %c0_i32_145 : i32
    %641 = arith.index_cast %640 : i32 to index
    %642 = memref.load %arg4[%641] : memref<16xf32, #tpu.memory_space<smem>>
    %c1_i32_146 = arith.constant 1 : i32
    %643 = arith.addi %639, %c1_i32_146 : i32
    %644 = arith.index_cast %643 : i32 to index
    %645 = memref.load %arg4[%644] : memref<16xf32, #tpu.memory_space<smem>>
    %c2_i32_147 = arith.constant 2 : i32
    %646 = arith.addi %639, %c2_i32_147 : i32
    %647 = arith.index_cast %646 : i32 to index
    %648 = memref.load %arg4[%647] : memref<16xf32, #tpu.memory_space<smem>>
    %c3_i32_148 = arith.constant 3 : i32
    %649 = arith.addi %639, %c3_i32_148 : i32
    %650 = arith.index_cast %649 : i32 to index
    %651 = memref.load %arg4[%650] : memref<16xf32, #tpu.memory_space<smem>>
    %652 = vector.broadcast %637 : i32 to vector<3x8xi32>
    %653 = arith.cmpi eq, %2, %652 : vector<3x8xi32>
    %654 = arith.extui %653 : vector<3x8xi1> to vector<3x8xi32>
    %655 = arith.sitofp %654 : vector<3x8xi32> to vector<3x8xf32>
    %656 = arith.mulf %458, %655 : vector<3x8xf32>
    %cst_149 = arith.constant dense<0.000000e+00> : vector<8xf32>
    %657 = vector.multi_reduction <add>, %656, %cst_149 [0] : vector<3x8xf32> to vector<8xf32>
    %658 = vector.shape_cast %657 : vector<8xf32> to vector<1x8xf32>
    %659 = arith.mulf %484, %655 : vector<3x8xf32>
    %cst_150 = arith.constant dense<0.000000e+00> : vector<8xf32>
    %660 = vector.multi_reduction <add>, %659, %cst_150 [0] : vector<3x8xf32> to vector<8xf32>
    %661 = vector.shape_cast %660 : vector<8xf32> to vector<1x8xf32>
    %662 = arith.mulf %661, %489 : vector<1x8xf32>
    %663 = vector.broadcast %642 : f32 to vector<1x8xf32>
    %664 = arith.subf %461, %663 : vector<1x8xf32>
    %665 = math.absf %664 : vector<1x8xf32>
    %666 = vector.broadcast %645 : f32 to vector<1x8xf32>
    %667 = arith.subf %462, %666 : vector<1x8xf32>
    %668 = math.absf %667 : vector<1x8xf32>
    %669 = arith.addf %665, %668 : vector<1x8xf32>
    %670 = vector.broadcast %648 : f32 to vector<1x8xf32>
    %671 = arith.subf %463, %670 : vector<1x8xf32>
    %672 = math.absf %671 : vector<1x8xf32>
    %673 = arith.addf %669, %672 : vector<1x8xf32>
    %674 = vector.broadcast %651 : f32 to vector<1x8xf32>
    %675 = arith.subf %464, %674 : vector<1x8xf32>
    %676 = math.absf %675 : vector<1x8xf32>
    %677 = arith.addf %673, %676 : vector<1x8xf32>
    %cst_151 = arith.constant 5.000000e-01 : f32
    %678 = arith.mulf %cst_151, %648 : f32
    %679 = arith.subf %642, %678 : f32
    %cst_152 = arith.constant 5.000000e-01 : f32
    %680 = arith.mulf %cst_152, %651 : f32
    %681 = arith.subf %645, %680 : f32
    %cst_153 = arith.constant 5.000000e-01 : f32
    %682 = arith.mulf %cst_153, %648 : f32
    %683 = arith.addf %642, %682 : f32
    %cst_154 = arith.constant 5.000000e-01 : f32
    %684 = arith.mulf %cst_154, %651 : f32
    %685 = arith.addf %645, %684 : f32
    %686 = arith.subf %683, %679 : f32
    %687 = arith.subf %685, %681 : f32
    %688 = arith.mulf %686, %687 : f32
    %689 = vector.broadcast %683 : f32 to vector<1x8xf32>
    %690 = arith.minimumf %473, %689 : vector<1x8xf32>
    %691 = vector.broadcast %679 : f32 to vector<1x8xf32>
    %692 = arith.maximumf %467, %691 : vector<1x8xf32>
    %693 = arith.subf %690, %692 : vector<1x8xf32>
    %cst_155 = arith.constant 0.000000e+00 : f32
    %694 = vector.broadcast %cst_155 : f32 to vector<1x8xf32>
    %695 = arith.maximumf %693, %694 : vector<1x8xf32>
    %696 = vector.broadcast %685 : f32 to vector<1x8xf32>
    %697 = arith.minimumf %476, %696 : vector<1x8xf32>
    %698 = vector.broadcast %681 : f32 to vector<1x8xf32>
    %699 = arith.maximumf %470, %698 : vector<1x8xf32>
    %700 = arith.subf %697, %699 : vector<1x8xf32>
    %cst_156 = arith.constant 0.000000e+00 : f32
    %701 = vector.broadcast %cst_156 : f32 to vector<1x8xf32>
    %702 = arith.maximumf %700, %701 : vector<1x8xf32>
    %703 = arith.mulf %695, %702 : vector<1x8xf32>
    %704 = vector.broadcast %688 : f32 to vector<1x8xf32>
    %705 = arith.addf %479, %704 : vector<1x8xf32>
    %706 = arith.subf %705, %703 : vector<1x8xf32>
    %cst_157 = arith.constant 9.99999996E-13 : f32
    %707 = vector.broadcast %cst_157 : f32 to vector<1x8xf32>
    %708 = arith.maximumf %706, %707 : vector<1x8xf32>
    %709 = vector.broadcast %683 : f32 to vector<1x8xf32>
    %710 = arith.maximumf %473, %709 : vector<1x8xf32>
    %711 = vector.broadcast %679 : f32 to vector<1x8xf32>
    %712 = arith.minimumf %467, %711 : vector<1x8xf32>
    %713 = arith.subf %710, %712 : vector<1x8xf32>
    %714 = vector.broadcast %685 : f32 to vector<1x8xf32>
    %715 = arith.maximumf %476, %714 : vector<1x8xf32>
    %716 = vector.broadcast %681 : f32 to vector<1x8xf32>
    %717 = arith.minimumf %470, %716 : vector<1x8xf32>
    %718 = arith.subf %715, %717 : vector<1x8xf32>
    %719 = arith.mulf %713, %718 : vector<1x8xf32>
    %cst_158 = arith.constant 9.99999996E-13 : f32
    %720 = vector.broadcast %cst_158 : f32 to vector<1x8xf32>
    %721 = arith.maximumf %719, %720 : vector<1x8xf32>
    %722 = arith.divf %703, %708 : vector<1x8xf32>
    %723 = arith.subf %721, %708 : vector<1x8xf32>
    %724 = arith.divf %723, %721 : vector<1x8xf32>
    %725 = arith.subf %722, %724 : vector<1x8xf32>
    %cst_159 = arith.constant 0.000000e+00 : f32
    %726 = vector.broadcast %cst_159 : f32 to vector<1x8xf32>
    %727 = arith.subf %726, %662 : vector<1x8xf32>
    %cst_160 = arith.constant 5.000000e+00 : f32
    %728 = vector.broadcast %cst_160 : f32 to vector<1x8xf32>
    %729 = arith.mulf %728, %677 : vector<1x8xf32>
    %730 = arith.addf %727, %729 : vector<1x8xf32>
    %cst_161 = arith.constant 2.000000e+00 : f32
    %731 = vector.broadcast %cst_161 : f32 to vector<1x8xf32>
    %732 = arith.mulf %731, %725 : vector<1x8xf32>
    %733 = arith.subf %730, %732 : vector<1x8xf32>
    %734 = arith.addf %733, %612 : vector<1x8xf32>
    %cst_162 = arith.constant dense<0x7F800000> : vector<1xf32>
    %735 = vector.multi_reduction <minimumf>, %734, %cst_162 [1] : vector<1x8xf32> to vector<1xf32>
    %736 = vector.shape_cast %735 : vector<1xf32> to vector<1x1xf32>
    %737 = vector.broadcast %736 : vector<1x1xf32> to vector<1x8xf32>
    %738 = arith.cmpf ole, %734, %737 : vector<1x8xf32>
    %cst_163 = arith.constant 8.000000e+00 : f32
    %739 = vector.broadcast %cst_163 : f32 to vector<1x8xf32>
    %740 = arith.select %738, %1, %739 : vector<1x8xi1>, vector<1x8xf32>
    %cst_164 = arith.constant dense<0x7F800000> : vector<1xf32>
    %741 = vector.multi_reduction <minimumf>, %740, %cst_164 [1] : vector<1x8xf32> to vector<1xf32>
    %742 = vector.shape_cast %741 : vector<1xf32> to vector<1x1xf32>
    %743 = vector.broadcast %742 : vector<1x1xf32> to vector<1x8xf32>
    %744 = arith.cmpf oeq, %1, %743 : vector<1x8xf32>
    %745 = arith.extui %744 : vector<1x8xi1> to vector<1x8xi32>
    %746 = arith.sitofp %745 : vector<1x8xi32> to vector<1x8xf32>
    %747 = vector.broadcast %634 : f32 to vector<1x8xf32>
    %748 = arith.mulf %746, %747 : vector<1x8xf32>
    %cst_165 = arith.constant 1.000000e+09 : f32
    %749 = vector.broadcast %cst_165 : f32 to vector<1x8xf32>
    %750 = arith.mulf %748, %749 : vector<1x8xf32>
    %751 = arith.addf %612, %750 : vector<1x8xf32>
    %752 = arith.addf %613, %748 : vector<1x8xf32>
    %753 = arith.mulf %748, %658 : vector<1x8xf32>
    %754 = arith.addf %615, %753 : vector<1x8xf32>
    %755 = arith.sitofp %637 : i32 to f32
    %756 = vector.broadcast %755 : f32 to vector<1x8xf32>
    %757 = arith.mulf %748, %756 : vector<1x8xf32>
    %758 = arith.addf %619, %757 : vector<1x8xf32>
    %759 = vector.broadcast %642 : f32 to vector<1x8xf32>
    %760 = arith.mulf %748, %759 : vector<1x8xf32>
    %761 = arith.addf %622, %760 : vector<1x8xf32>
    %762 = vector.broadcast %645 : f32 to vector<1x8xf32>
    %763 = arith.mulf %748, %762 : vector<1x8xf32>
    %764 = arith.addf %625, %763 : vector<1x8xf32>
    %765 = vector.broadcast %648 : f32 to vector<1x8xf32>
    %766 = arith.mulf %748, %765 : vector<1x8xf32>
    %767 = arith.addf %628, %766 : vector<1x8xf32>
    %768 = vector.broadcast %651 : f32 to vector<1x8xf32>
    %769 = arith.mulf %748, %768 : vector<1x8xf32>
    %770 = arith.addf %631, %769 : vector<1x8xf32>
    %c2_i32_166 = arith.constant 2 : i32
    %771 = vector.extract_strided_slice %458 {offsets = [2, 0], sizes = [1, 8], strides = [1, 1]} : vector<3x8xf32> to vector<1x8xf32>
    %772 = arith.mulf %752, %754 : vector<1x8xf32>
    %cst_167 = arith.constant 1.000000e+00 : f32
    %773 = vector.broadcast %cst_167 : f32 to vector<1x8xf32>
    %774 = arith.subf %773, %752 : vector<1x8xf32>
    %775 = arith.mulf %774, %771 : vector<1x8xf32>
    %776 = arith.addf %772, %775 : vector<1x8xf32>
    %cst_168 = arith.constant 1.000000e+00 : f32
    %777 = vector.broadcast %cst_168 : f32 to vector<1x8xf32>
    %778 = arith.subf %777, %752 : vector<1x8xf32>
    %cst_169 = arith.constant 1.000000e-01 : f32
    %779 = vector.broadcast %cst_169 : f32 to vector<1x8xf32>
    %780 = arith.mulf %778, %779 : vector<1x8xf32>
    %781 = arith.addf %752, %780 : vector<1x8xf32>
    %782 = arith.subf %488, %776 : vector<1x8xf32>
    %783 = arith.mulf %781, %782 : vector<1x8xf32>
    %cst_170 = arith.constant dense<0.000000e+00> : vector<1xf32>
    %784 = vector.multi_reduction <add>, %783, %cst_170 [1] : vector<1x8xf32> to vector<1xf32>
    %785 = vector.shape_cast %784 : vector<1xf32> to vector<1x1xf32>
    %786 = arith.addf %342, %785 : vector<1x1xf32>
    %cst_171 = arith.constant dense<0.000000e+00> : vector<1xf32>
    %787 = vector.multi_reduction <add>, %781, %cst_171 [1] : vector<1x8xf32> to vector<1xf32>
    %788 = vector.shape_cast %787 : vector<1xf32> to vector<1x1xf32>
    %789 = arith.addf %345, %788 : vector<1x1xf32>
    %790 = vector.broadcast %481 : vector<1x8xf32> to vector<3x8xf32>
    %791 = arith.cmpf oge, %458, %790 : vector<3x8xf32>
    %cst_172 = arith.constant 3.000000e+00 : f32
    %792 = vector.broadcast %cst_172 : f32 to vector<3x8xf32>
    %793 = arith.select %791, %3, %792 : vector<3x8xi1>, vector<3x8xf32>
    %cst_173 = arith.constant dense<0x7F800000> : vector<8xf32>
    %794 = vector.multi_reduction <minimumf>, %793, %cst_173 [0] : vector<3x8xf32> to vector<8xf32>
    %795 = vector.shape_cast %794 : vector<8xf32> to vector<1x8xf32>
    %796 = arith.cmpf oeq, %795, %758 : vector<1x8xf32>
    %797 = arith.extui %796 : vector<1x8xi1> to vector<1x8xi32>
    %798 = arith.sitofp %797 : vector<1x8xi32> to vector<1x8xf32>
    %799 = arith.mulf %798, %752 : vector<1x8xf32>
    %cst_174 = arith.constant dense<0.000000e+00> : vector<1xf32>
    %800 = vector.multi_reduction <add>, %799, %cst_174 [1] : vector<1x8xf32> to vector<1xf32>
    %801 = vector.shape_cast %800 : vector<1xf32> to vector<1x1xf32>
    %802 = arith.addf %358, %801 : vector<1x1xf32>
    %cst_175 = arith.constant dense<0.000000e+00> : vector<1xf32>
    %803 = vector.multi_reduction <add>, %752, %cst_175 [1] : vector<1x8xf32> to vector<1xf32>
    %804 = vector.shape_cast %803 : vector<1xf32> to vector<1x1xf32>
    %805 = arith.addf %361, %804 : vector<1x1xf32>
    %c0_176 = arith.constant 0 : index
    %c1_177 = arith.constant 1 : index
    %c0_178 = arith.constant 0 : index
    %806 = vector.load %arg7[%c0_176, %c1_177, %c0_178] : memref<1x2x2xf32, #tpu.memory_space<vmem>>, vector<1x1x2xf32>
    %807 = vector.shape_cast %806 : vector<1x1x2xf32> to vector<1x2xf32>
    %cst_179 = arith.constant dense<0xFF800000> : vector<1xf32>
    %808 = vector.multi_reduction <maximumf>, %807, %cst_179 [1] : vector<1x2xf32> to vector<1xf32>
    %809 = vector.shape_cast %808 : vector<1xf32> to vector<1x1xf32>
    %810 = vector.broadcast %809 : vector<1x1xf32> to vector<1x2xf32>
    %811 = arith.subf %807, %810 : vector<1x2xf32>
    %812 = math.exp %811 : vector<1x2xf32>
    %cst_180 = arith.constant dense<0.000000e+00> : vector<1xf32>
    %813 = vector.multi_reduction <add>, %812, %cst_180 [1] : vector<1x2xf32> to vector<1xf32>
    %814 = vector.shape_cast %813 : vector<1xf32> to vector<1x1xf32>
    %815 = math.log %814 : vector<1x1xf32>
    %816 = arith.addf %809, %815 : vector<1x1xf32>
    %c1_181 = arith.constant 1 : index
    %817 = memref.load %arg3[%c1_181] : memref<2xi32, #tpu.memory_space<smem>>
    %818 = vector.broadcast %817 : i32 to vector<1x2xi32>
    %819 = arith.cmpi eq, %4, %818 : vector<1x2xi32>
    %820 = arith.extui %819 : vector<1x2xi1> to vector<1x2xi32>
    %821 = arith.sitofp %820 : vector<1x2xi32> to vector<1x2xf32>
    %822 = arith.addf %382, %816 : vector<1x1xf32>
    %823 = arith.mulf %807, %821 : vector<1x2xf32>
    %cst_182 = arith.constant dense<0.000000e+00> : vector<1xf32>
    %824 = vector.multi_reduction <add>, %823, %cst_182 [1] : vector<1x2xf32> to vector<1xf32>
    %825 = vector.shape_cast %824 : vector<1xf32> to vector<1x1xf32>
    %826 = arith.subf %822, %825 : vector<1x1xf32>
    %cst_183 = arith.constant 1.000000e+00 : f32
    %827 = vector.broadcast %cst_183 : f32 to vector<1x1xf32>
    %828 = arith.addf %384, %827 : vector<1x1xf32>
    %829 = arith.subf %461, %761 : vector<1x8xf32>
    %830 = math.absf %829 : vector<1x8xf32>
    %831 = arith.subf %462, %764 : vector<1x8xf32>
    %832 = math.absf %831 : vector<1x8xf32>
    %833 = arith.addf %830, %832 : vector<1x8xf32>
    %834 = arith.subf %463, %767 : vector<1x8xf32>
    %835 = math.absf %834 : vector<1x8xf32>
    %836 = arith.addf %833, %835 : vector<1x8xf32>
    %837 = arith.subf %464, %770 : vector<1x8xf32>
    %838 = math.absf %837 : vector<1x8xf32>
    %839 = arith.addf %836, %838 : vector<1x8xf32>
    %840 = arith.mulf %839, %752 : vector<1x8xf32>
    %cst_184 = arith.constant dense<0.000000e+00> : vector<1xf32>
    %841 = vector.multi_reduction <add>, %840, %cst_184 [1] : vector<1x8xf32> to vector<1xf32>
    %842 = vector.shape_cast %841 : vector<1xf32> to vector<1x1xf32>
    %843 = arith.addf %399, %842 : vector<1x1xf32>
    %cst_185 = arith.constant 5.000000e-01 : f32
    %844 = vector.broadcast %cst_185 : f32 to vector<1x8xf32>
    %845 = arith.mulf %844, %767 : vector<1x8xf32>
    %846 = arith.subf %761, %845 : vector<1x8xf32>
    %cst_186 = arith.constant 5.000000e-01 : f32
    %847 = vector.broadcast %cst_186 : f32 to vector<1x8xf32>
    %848 = arith.mulf %847, %770 : vector<1x8xf32>
    %849 = arith.subf %764, %848 : vector<1x8xf32>
    %cst_187 = arith.constant 5.000000e-01 : f32
    %850 = vector.broadcast %cst_187 : f32 to vector<1x8xf32>
    %851 = arith.mulf %850, %767 : vector<1x8xf32>
    %852 = arith.addf %761, %851 : vector<1x8xf32>
    %cst_188 = arith.constant 5.000000e-01 : f32
    %853 = vector.broadcast %cst_188 : f32 to vector<1x8xf32>
    %854 = arith.mulf %853, %770 : vector<1x8xf32>
    %855 = arith.addf %764, %854 : vector<1x8xf32>
    %856 = arith.subf %852, %846 : vector<1x8xf32>
    %857 = arith.subf %855, %849 : vector<1x8xf32>
    %858 = arith.mulf %856, %857 : vector<1x8xf32>
    %859 = arith.minimumf %473, %852 : vector<1x8xf32>
    %860 = arith.maximumf %467, %846 : vector<1x8xf32>
    %861 = arith.subf %859, %860 : vector<1x8xf32>
    %cst_189 = arith.constant 0.000000e+00 : f32
    %862 = vector.broadcast %cst_189 : f32 to vector<1x8xf32>
    %863 = arith.maximumf %861, %862 : vector<1x8xf32>
    %864 = arith.minimumf %476, %855 : vector<1x8xf32>
    %865 = arith.maximumf %470, %849 : vector<1x8xf32>
    %866 = arith.subf %864, %865 : vector<1x8xf32>
    %cst_190 = arith.constant 0.000000e+00 : f32
    %867 = vector.broadcast %cst_190 : f32 to vector<1x8xf32>
    %868 = arith.maximumf %866, %867 : vector<1x8xf32>
    %869 = arith.mulf %863, %868 : vector<1x8xf32>
    %870 = arith.addf %479, %858 : vector<1x8xf32>
    %871 = arith.subf %870, %869 : vector<1x8xf32>
    %872 = arith.maximumf %473, %852 : vector<1x8xf32>
    %873 = arith.minimumf %467, %846 : vector<1x8xf32>
    %874 = arith.subf %872, %873 : vector<1x8xf32>
    %875 = arith.maximumf %476, %855 : vector<1x8xf32>
    %876 = arith.minimumf %470, %849 : vector<1x8xf32>
    %877 = arith.subf %875, %876 : vector<1x8xf32>
    %878 = arith.mulf %874, %877 : vector<1x8xf32>
    %cst_191 = arith.constant 0.000000e+00 : f32
    %879 = vector.broadcast %cst_191 : f32 to vector<1x8xf32>
    %880 = arith.cmpf ogt, %752, %879 : vector<1x8xf32>
    %cst_192 = arith.constant 9.99999996E-13 : f32
    %881 = vector.broadcast %cst_192 : f32 to vector<1x8xf32>
    %882 = arith.maximumf %871, %881 : vector<1x8xf32>
    %cst_193 = arith.constant 1.000000e+00 : f32
    %883 = vector.broadcast %cst_193 : f32 to vector<1x8xf32>
    %884 = arith.select %880, %882, %883 : vector<1x8xi1>, vector<1x8xf32>
    %cst_194 = arith.constant 0.000000e+00 : f32
    %885 = vector.broadcast %cst_194 : f32 to vector<1x8xf32>
    %886 = arith.cmpf ogt, %752, %885 : vector<1x8xf32>
    %cst_195 = arith.constant 9.99999996E-13 : f32
    %887 = vector.broadcast %cst_195 : f32 to vector<1x8xf32>
    %888 = arith.maximumf %878, %887 : vector<1x8xf32>
    %cst_196 = arith.constant 1.000000e+00 : f32
    %889 = vector.broadcast %cst_196 : f32 to vector<1x8xf32>
    %890 = arith.select %886, %888, %889 : vector<1x8xi1>, vector<1x8xf32>
    %891 = arith.divf %869, %884 : vector<1x8xf32>
    %892 = arith.subf %878, %871 : vector<1x8xf32>
    %893 = arith.divf %892, %890 : vector<1x8xf32>
    %894 = arith.subf %891, %893 : vector<1x8xf32>
    %cst_197 = arith.constant 1.000000e+00 : f32
    %895 = vector.broadcast %cst_197 : f32 to vector<1x8xf32>
    %896 = arith.subf %895, %894 : vector<1x8xf32>
    %897 = arith.mulf %896, %752 : vector<1x8xf32>
    %cst_198 = arith.constant dense<0.000000e+00> : vector<1xf32>
    %898 = vector.multi_reduction <add>, %897, %cst_198 [1] : vector<1x8xf32> to vector<1xf32>
    %899 = vector.shape_cast %898 : vector<1xf32> to vector<1x1xf32>
    %900 = arith.addf %456, %899 : vector<1x1xf32>
    %901 = tpu.iota {dimensions = array<i32: 1>} : vector<1x128xi32>
    %c0_i32_199 = arith.constant 0 : i32
    %902 = vector.broadcast %c0_i32_199 : i32 to vector<1x128xi32>
    %903 = arith.cmpi eq, %901, %902 : vector<1x128xi32>
    %904 = arith.extui %903 : vector<1x128xi1> to vector<1x128xi32>
    %905 = arith.sitofp %904 : vector<1x128xi32> to vector<1x128xf32>
    %906 = vector.broadcast %786 : vector<1x1xf32> to vector<1x128xf32>
    %907 = arith.mulf %906, %905 : vector<1x128xf32>
    %c1_i32_200 = arith.constant 1 : i32
    %908 = vector.broadcast %c1_i32_200 : i32 to vector<1x128xi32>
    %909 = arith.cmpi eq, %901, %908 : vector<1x128xi32>
    %910 = arith.extui %909 : vector<1x128xi1> to vector<1x128xi32>
    %911 = arith.sitofp %910 : vector<1x128xi32> to vector<1x128xf32>
    %912 = vector.broadcast %789 : vector<1x1xf32> to vector<1x128xf32>
    %913 = arith.mulf %912, %911 : vector<1x128xf32>
    %914 = arith.addf %907, %913 : vector<1x128xf32>
    %c2_i32_201 = arith.constant 2 : i32
    %915 = vector.broadcast %c2_i32_201 : i32 to vector<1x128xi32>
    %916 = arith.cmpi eq, %901, %915 : vector<1x128xi32>
    %917 = arith.extui %916 : vector<1x128xi1> to vector<1x128xi32>
    %918 = arith.sitofp %917 : vector<1x128xi32> to vector<1x128xf32>
    %919 = vector.broadcast %826 : vector<1x1xf32> to vector<1x128xf32>
    %920 = arith.mulf %919, %918 : vector<1x128xf32>
    %921 = arith.addf %914, %920 : vector<1x128xf32>
    %c3_i32_202 = arith.constant 3 : i32
    %922 = vector.broadcast %c3_i32_202 : i32 to vector<1x128xi32>
    %923 = arith.cmpi eq, %901, %922 : vector<1x128xi32>
    %924 = arith.extui %923 : vector<1x128xi1> to vector<1x128xi32>
    %925 = arith.sitofp %924 : vector<1x128xi32> to vector<1x128xf32>
    %926 = vector.broadcast %828 : vector<1x1xf32> to vector<1x128xf32>
    %927 = arith.mulf %926, %925 : vector<1x128xf32>
    %928 = arith.addf %921, %927 : vector<1x128xf32>
    %c4_i32_203 = arith.constant 4 : i32
    %929 = vector.broadcast %c4_i32_203 : i32 to vector<1x128xi32>
    %930 = arith.cmpi eq, %901, %929 : vector<1x128xi32>
    %931 = arith.extui %930 : vector<1x128xi1> to vector<1x128xi32>
    %932 = arith.sitofp %931 : vector<1x128xi32> to vector<1x128xf32>
    %933 = vector.broadcast %802 : vector<1x1xf32> to vector<1x128xf32>
    %934 = arith.mulf %933, %932 : vector<1x128xf32>
    %935 = arith.addf %928, %934 : vector<1x128xf32>
    %c5_i32 = arith.constant 5 : i32
    %936 = vector.broadcast %c5_i32 : i32 to vector<1x128xi32>
    %937 = arith.cmpi eq, %901, %936 : vector<1x128xi32>
    %938 = arith.extui %937 : vector<1x128xi1> to vector<1x128xi32>
    %939 = arith.sitofp %938 : vector<1x128xi32> to vector<1x128xf32>
    %940 = vector.broadcast %805 : vector<1x1xf32> to vector<1x128xf32>
    %941 = arith.mulf %940, %939 : vector<1x128xf32>
    %942 = arith.addf %935, %941 : vector<1x128xf32>
    %c6_i32 = arith.constant 6 : i32
    %943 = vector.broadcast %c6_i32 : i32 to vector<1x128xi32>
    %944 = arith.cmpi eq, %901, %943 : vector<1x128xi32>
    %945 = arith.extui %944 : vector<1x128xi1> to vector<1x128xi32>
    %946 = arith.sitofp %945 : vector<1x128xi32> to vector<1x128xf32>
    %947 = vector.broadcast %843 : vector<1x1xf32> to vector<1x128xf32>
    %948 = arith.mulf %947, %946 : vector<1x128xf32>
    %949 = arith.addf %942, %948 : vector<1x128xf32>
    %c7_i32 = arith.constant 7 : i32
    %950 = vector.broadcast %c7_i32 : i32 to vector<1x128xi32>
    %951 = arith.cmpi eq, %901, %950 : vector<1x128xi32>
    %952 = arith.extui %951 : vector<1x128xi1> to vector<1x128xi32>
    %953 = arith.sitofp %952 : vector<1x128xi32> to vector<1x128xf32>
    %954 = vector.broadcast %900 : vector<1x1xf32> to vector<1x128xf32>
    %955 = arith.mulf %954, %953 : vector<1x128xf32>
    %956 = arith.addf %949, %955 : vector<1x128xf32>
    %957 = vector.shape_cast %956 : vector<1x128xf32> to vector<1x1x128xf32>
    %c0_204 = arith.constant 0 : index
    %c0_205 = arith.constant 0 : index
    %c0_206 = arith.constant 0 : index
    %958 = vector.load %arg8[%c0_204, %c0_205, %c0_206] : memref<1x1x128xf32, #tpu.memory_space<vmem>>, vector<1x1x128xf32>
    tpu.vector_store %arg8[%c0_204, %c0_205, %c0_206], %957 {strides = array<i32>} : memref<1x1x128xf32, #tpu.memory_space<vmem>>, vector<1x1x128xf32>,
    return
  }
  func.func @transform_0(%arg0: i32, %arg1: memref<2xi32, #tpu.memory_space<smem>>, %arg2: memref<4xi32, #tpu.memory_space<smem>>, %arg3: memref<2xi32, #tpu.memory_space<smem>>, %arg4: memref<16xf32, #tpu.memory_space<smem>>) -> (i32, i32, i32, i32) {
    %c0_i32 = arith.constant 0 : i32
    %c0_i32_0 = arith.constant 0 : i32
    %c0_i32_1 = arith.constant 0 : i32
    %c0_i32_2 = arith.constant 0 : i32
    return %arg0, %c0_i32, %c0_i32_0, %c0_i32_1 : i32, i32, i32, i32
  }
  func.func @transform_1(%arg0: i32, %arg1: memref<2xi32, #tpu.memory_space<smem>>, %arg2: memref<4xi32, #tpu.memory_space<smem>>, %arg3: memref<2xi32, #tpu.memory_space<smem>>, %arg4: memref<16xf32, #tpu.memory_space<smem>>) -> (i32, i32, i32, i32) {
    %c0_i32 = arith.constant 0 : i32
    %c0_i32_0 = arith.constant 0 : i32
    %c0_i32_1 = arith.constant 0 : i32
    %c0_i32_2 = arith.constant 0 : i32
    return %arg0, %c0_i32, %c0_i32_0, %c0_i32_1 : i32, i32, i32, i32
  }
  func.func @transform_2(%arg0: i32, %arg1: memref<2xi32, #tpu.memory_space<smem>>, %arg2: memref<4xi32, #tpu.memory_space<smem>>, %arg3: memref<2xi32, #tpu.memory_space<smem>>, %arg4: memref<16xf32, #tpu.memory_space<smem>>) -> (i32, i32, i32) {
    %c0_i32 = arith.constant 0 : i32
    %c0_i32_0 = arith.constant 0 : i32
    %c0_i32_1 = arith.constant 0 : i32
    return %arg0, %c0_i32, %c0_i32_0 : i32, i32, i32
  }
  func.func @transform_3(%arg0: i32, %arg1: memref<2xi32, #tpu.memory_space<smem>>, %arg2: memref<4xi32, #tpu.memory_space<smem>>, %arg3: memref<2xi32, #tpu.memory_space<smem>>, %arg4: memref<16xf32, #tpu.memory_space<smem>>) -> (i32, i32, i32) {
    %c0_i32 = arith.constant 0 : i32
    %c0_i32_0 = arith.constant 0 : i32
    %c0_i32_1 = arith.constant 0 : i32
    return %arg0, %c0_i32, %c0_i32_0 : i32, i32, i32
  }
}

</mosaic_0001>

<llo_original>
// kernel: tpu_custom_call.1
$region0: #{tpu_custom_call.1}
  #allocation0 [shape = 'u32[]', space=smem, size = 0x4, offset = 0x4, fixed_abs, tag = 'smem constant byte address 0x4 - core index']
  #allocation1 [shape = 'u32[72,128]{1,0:T(1,128)}', space=vmem, size = 0x9000, scoped, tag = 'internal scratch']
  #allocation2 [shape = 's32[1]{0}', space=sflag, size = 0x4, scoped, tag = 'scoped memory for tpu_custom_call.1']
  #allocation3 [shape = 'u8[512]{0}', space=smem, size = 0x200, scoped, tag = 'prefetched SMEM operand 0']
  #allocation4 [shape = 'u8[512]{0}', space=smem, size = 0x200, scoped, tag = 'prefetched SMEM operand 1']
  #allocation5 [shape = 'u8[512]{0}', space=smem, size = 0x200, scoped, tag = 'prefetched SMEM operand 2']
  #allocation6 [shape = 'u8[512]{0}', space=smem, size = 0x200, scoped, tag = 'prefetched SMEM operand 3']
  %s0 = inlined_call_operand.vmem [shape: s32[2], index: 0, kind: input, shape index: {}]
  %s1 = inlined_call_operand.vmem [shape: s32[4], index: 1, kind: input, shape index: {}]
  %s2 = inlined_call_operand.vmem [shape: s32[2], index: 2, kind: input, shape index: {}]
  %s3 = inlined_call_operand.vmem [shape: f32[16], index: 3, kind: input, shape index: {}]
  %s4 = inlined_call_operand.vmem [shape: f32[2,2,3,8], index: 4, kind: input, shape index: {}]
  %s5 = inlined_call_operand.vmem [shape: f32[2,2,4,8], index: 5, kind: input, shape index: {}]
  %s6 = inlined_call_operand.vmem [shape: f32[2,2,2], index: 6, kind: input, shape index: {}]
  %s7 = inlined_call_operand.hbm [shape: f32[2,1,128], index: 7, kind: output, shape index: {}]
  %s8 = sld [smem:[#allocation0]]
  $region45: #{tpu_custom_call.1} parent=0
    _
  %s10 = ssub.s32 1, %s8
  %s11 = scalar_select 0, %s10, %s8
  %s13 = sshll.u32 %s0, 4
  %s14 = int_to_ptr.vmem [resolvable:$true] %s13
  %16 = dma.vmem_to_smem %s14, 16, [#allocation3], [#allocation2]
  %s18 = sshll.u32 %s1, 4
  %s19 = int_to_ptr.vmem [resolvable:$true] %s18
  %21 = dma.vmem_to_smem %s19, 16, [#allocation4], [#allocation2]
  %s23 = sshll.u32 %s2, 4
  %s24 = int_to_ptr.vmem [resolvable:$true] %s23
  %26 = dma.vmem_to_smem %s24, 16, [#allocation5], [#allocation2]
  %s28 = sshll.u32 %s3, 4
  %s29 = int_to_ptr.vmem [resolvable:$true] %s28
  %31 = dma.vmem_to_smem %s29, 16, [#allocation6], [#allocation2]
  %33 = dma.done [#allocation2], 64
  %34 = sfence
  $region1: #{tpu_custom_call.1} parent=0
    #allocation7 [shape = 'u8[1024]{0}', space=vmem, size = 0x400, scoped, tag = 'output window, operand 0']
    #allocation8 [shape = 's32[2]{0}', space=sflag, size = 0x8, scoped, tag = 'scoped memory for tpu_custom_call.1']
    %35 = vsyncpa [#allocation8], 0
    %s36 = scalar_lea.sflag [#allocation8], 1
    %37 = vsyncpa %s36, 0
    loop: start=0, step=1, limit=4
    $region2: #{tpu_custom_call.1} parent=1 // loop_pre_header
      _
    $region3: #{tpu_custom_call.1} parent=1 // loop_header
      %s39 = sphi 0, %s43
      %p40 = scmp.ge.s32.totalorder %s39, 4
      %s49 = sphi 0, %s51
      %s52 = sphi 0, %s49
      %s53 = sphi 0, %s52
      %s69 = sphi 0, %s53
      %s75 = sphi 0, %s77
      %s78 = sphi 0, %s75
      %s79 = sphi 0, %s78
      %s95 = sphi 0, %s79
      %s101 = sphi 0, %s103
      %s104 = sphi 0, %s101
      %s105 = sphi 0, %s104
      %s121 = sphi 0, %s105
      %s127 = sphi 0, %s129
      %s130 = sphi 0, %s127
      %s131 = sphi 0, %s130
      %s147 = sphi 0, %s131
    $region4: #{tpu_custom_call.1} parent=1 // loop_header_branch
      %42 = sbr.rel (%p40) target = $region8
    $region5: #{tpu_custom_call.1} parent=1 // loop_body
      %s44 = ssub.s32 %s39, 1
      %s45 = ssub.s32 %s39, 2
      %s46 = sadd.s32 %s39, 1
      %s47 = ssub.s32 %s39, %s46
      %p48 = scmp.eq.s32.totalorder %s47, 0
      %s50 = sadd.s32 %s49, 1
      %s51 = scalar_select %p48, %s49, %s50
      %p54 = pneg %p48
      %p55 = scmp.eq.s32.totalorder %s39, 1
      %p56 = por %p54, %p55
      %p57 = scmp.ne.s32.totalorder %s49, %s52
      %p58 = scmp.eq.s32.totalorder %s39, 0
      %p59 = por %p57, %p58
      %p60 = scmp.ne.s32.totalorder %s49, %s52
      %p61 = scmp.eq.s32.totalorder %s44, 1
      %p62 = por %p60, %p61
      %p63 = scmp.ne.s32.totalorder %s52, %s53
      %p64 = scmp.eq.s32.totalorder %s44, 0
      %p65 = por %p63, %p64
      %p66 = scmp.ne.s32.totalorder %s52, %s53
      %p67 = scmp.eq.s32.totalorder %s45, 1
      %p68 = por %p66, %p67
      %p70 = scmp.ne.s32.totalorder %s53, %s69
      %p71 = scmp.eq.s32.totalorder %s45, 0
      %p72 = por %p70, %p71
      %s73 = ssub.s32 %s39, %s46
      %p74 = scmp.eq.s32.totalorder %s73, 0
      %s76 = sadd.s32 %s75, 1
      %s77 = scalar_select %p74, %s75, %s76
      %p80 = pneg %p74
      %p81 = scmp.eq.s32.totalorder %s39, 1
      %p82 = por %p80, %p81
      %p83 = scmp.ne.s32.totalorder %s75, %s78
      %p84 = scmp.eq.s32.totalorder %s39, 0
      %p85 = por %p83, %p84
      %p86 = scmp.ne.s32.totalorder %s75, %s78
      %p87 = scmp.eq.s32.totalorder %s44, 1
      %p88 = por %p86, %p87
      %p89 = scmp.ne.s32.totalorder %s78, %s79
      %p90 = scmp.eq.s32.totalorder %s44, 0
      %p91 = por %p89, %p90
      %p92 = scmp.ne.s32.totalorder %s78, %s79
      %p93 = scmp.eq.s32.totalorder %s45, 1
      %p94 = por %p92, %p93
      %p96 = scmp.ne.s32.totalorder %s79, %s95
      %p97 = scmp.eq.s32.totalorder %s45, 0
      %p98 = por %p96, %p97
      %s99 = ssub.s32 %s39, %s46
      %p100 = scmp.eq.s32.totalorder %s99, 0
      %s102 = sadd.s32 %s101, 1
      %s103 = scalar_select %p100, %s101, %s102
      %p106 = pneg %p100
      %p107 = scmp.eq.s32.totalorder %s39, 1
      %p108 = por %p106, %p107
      %p109 = scmp.ne.s32.totalorder %s101, %s104
      %p110 = scmp.eq.s32.totalorder %s39, 0
      %p111 = por %p109, %p110
      %p112 = scmp.ne.s32.totalorder %s101, %s104
      %p113 = scmp.eq.s32.totalorder %s44, 1
      %p114 = por %p112, %p113
      %p115 = scmp.ne.s32.totalorder %s104, %s105
      %p116 = scmp.eq.s32.totalorder %s44, 0
      %p117 = por %p115, %p116
      %p118 = scmp.ne.s32.totalorder %s104, %s105
      %p119 = scmp.eq.s32.totalorder %s45, 1
      %p120 = por %p118, %p119
      %p122 = scmp.ne.s32.totalorder %s105, %s121
      %p123 = scmp.eq.s32.totalorder %s45, 0
      %p124 = por %p122, %p123
      %s125 = ssub.s32 %s39, %s46
      %p126 = scmp.eq.s32.totalorder %s125, 0
      %s128 = sadd.s32 %s127, 1
      %s129 = scalar_select %p126, %s127, %s128
      %p132 = pneg %p126
      %p133 = scmp.eq.s32.totalorder %s39, 1
      %p134 = por %p132, %p133
      %p135 = scmp.ne.s32.totalorder %s127, %s130
      %p136 = scmp.eq.s32.totalorder %s39, 0
      %p137 = por %p135, %p136
      %p138 = scmp.ne.s32.totalorder %s127, %s130
      %p139 = scmp.eq.s32.totalorder %s44, 1
      %p140 = por %p138, %p139
      %p141 = scmp.ne.s32.totalorder %s130, %s131
      %p142 = scmp.eq.s32.totalorder %s44, 0
      %p143 = por %p141, %p142
      %p144 = scmp.ne.s32.totalorder %s130, %s131
      %p145 = scmp.eq.s32.totalorder %s45, 1
      %p146 = por %p144, %p145
      %p148 = scmp.ne.s32.totalorder %s131, %s147
      %p149 = scmp.eq.s32.totalorder %s45, 0
      %p150 = por %p148, %p149
      %p151 = scmp.le.s32.totalorder 1, %s39
      %p152 = scmp.lt.s32.totalorder %s39, 3
      %p153 = pnand %p151, %p152
      %p154 = pneg %p153
      // Predicated region
      $region9: #{tpu_custom_call.1} parent=5 // pred_check
        _
      $region10: #{tpu_custom_call.1} parent=5 // pred_check_branch
        %156 = sbr.rel (%p153) target = $region12
      $region11: #{tpu_custom_call.1} parent=5 // pred_region
        %s157 = ssub.s32 %s39, 1
      $region12: #{tpu_custom_call.1} parent=5 // pred_fallthru
        _
      %p158 = scmp.lt.s32.totalorder %s39, 2
      // Predicated region
      $region13: #{tpu_custom_call.1} parent=5 // pred_check
        %p159 = pneg %p158
      $region14: #{tpu_custom_call.1} parent=5 // pred_check_branch
        %161 = sbr.rel (%p159) target = $region16
      $region15: #{tpu_custom_call.1} parent=5 // pred_region
        // Predicated region
        $region17: #{tpu_custom_call.1} parent=15 // pred_check
          %p162 = pneg %p59
        $region18: #{tpu_custom_call.1} parent=15 // pred_check_branch
          %164 = sbr.rel (%p162) target = $region20
        $region19: #{tpu_custom_call.1} parent=15 // pred_region
          %p165 = scmp.lt.s32.totalorder %s39, 1
          %s166 = scalar_select %p165, %s39, 1
          %s167 = smul.addr %s166, 2
          %s168 = smul.addr %s167, 4
          %s169 = scalar_lea.vmem %s4, %s168
        $region20: #{tpu_custom_call.1} parent=15 // pred_fallthru
          _
        // Predicated region
        $region21: #{tpu_custom_call.1} parent=15 // pred_check
          %p170 = pneg %p85
        $region22: #{tpu_custom_call.1} parent=15 // pred_check_branch
          %172 = sbr.rel (%p170) target = $region24
        $region23: #{tpu_custom_call.1} parent=15 // pred_region
          %p173 = scmp.lt.s32.totalorder %s39, 1
          %s174 = scalar_select %p173, %s39, 1
          %s175 = smul.addr %s174, 2
          %s176 = smul.addr %s175, 4
          %s177 = scalar_lea.vmem %s5, %s176
        $region24: #{tpu_custom_call.1} parent=15 // pred_fallthru
          _
        // Predicated region
        $region25: #{tpu_custom_call.1} parent=15 // pred_check
          %p178 = pneg %p111
        $region26: #{tpu_custom_call.1} parent=15 // pred_check_branch
          %180 = sbr.rel (%p178) target = $region28
        $region27: #{tpu_custom_call.1} parent=15 // pred_region
          %p181 = scmp.lt.s32.totalorder %s39, 1
          %s182 = scalar_select %p181, %s39, 1
          %s183 = smul.addr %s182, 2
          %s184 = scalar_lea.vmem %s6, %s183
        $region28: #{tpu_custom_call.1} parent=15 // pred_fallthru
          _
      $region16: #{tpu_custom_call.1} parent=5 // pred_fallthru
        _
      %p185 = scmp.le.s32.totalorder 1, %s39
      %p186 = scmp.lt.s32.totalorder %s39, 3
      %p187 = pnand %p185, %p186
      %p188 = pneg %p187
      // Predicated region
      $region29: #{tpu_custom_call.1} parent=5 // pred_check
        _
      $region30: #{tpu_custom_call.1} parent=5 // pred_check_branch
        %190 = sbr.rel (%p187) target = $region32
      $region31: #{tpu_custom_call.1} parent=5 // pred_region
        %s191 = ssub.s32 %s39, 1
        %p192 = scmp.lt.s32.totalorder %s44, 1
        %s193 = scalar_select %p192, %s44, 1
        %s194 = smul.addr %s193, 2
        %s195 = smul.addr %s194, 4
        %s196 = scalar_lea.vmem %s4, %s195
        %p197 = pneg %p65
        %p198 = pneg %p62
        %p199 = scmp.lt.s32.totalorder %s44, 1
        %s200 = scalar_select %p199, %s44, 1
        %s201 = smul.addr %s200, 2
        %s202 = smul.addr %s201, 4
        %s203 = scalar_lea.vmem %s5, %s202
        %p204 = pneg %p91
        %p205 = pneg %p88
        %p206 = scmp.lt.s32.totalorder %s44, 1
        %s207 = scalar_select %p206, %s44, 1
        %s208 = smul.addr %s207, 2
        %s209 = scalar_lea.vmem %s6, %s208
        %p210 = pneg %p117
        %p211 = pneg %p114
        %p212 = pneg %p143
        %p213 = pneg %p140
        %s214 = sand.u32 %s130, 1
        %s215 = scalar_lea.sflag [#allocation8], %s214
        %s216 = sand.u32 %s130, 1
        %s217 = scalar_lea.vmem [#allocation7], %s216
        %p218 = scmp.lt.s32.totalorder %s44, 1
        %s219 = scalar_select %p218, %s44, 1
        %s220 = smul.addr %s219, 2
        %s221 = smul.addr %s220, 4
        %s222 = scalar_lea.vmem %s4, %s221
        %p223 = scmp.lt.s32.totalorder %s44, 1
        %s224 = scalar_select %p223, %s44, 1
        %s225 = smul.addr %s224, 2
        %s226 = smul.addr %s225, 4
        %s227 = scalar_lea.vmem %s5, %s226
        %p228 = scmp.lt.s32.totalorder %s44, 1
        %s229 = scalar_select %p228, %s44, 1
        %s230 = smul.addr %s229, 2
        %s231 = scalar_lea.vmem %s6, %s230
        %v232 = vlaneseq
        %v233 = vand.u32 %v232, 127
        %v234 = vcvt.s32.f32 %v233
        %v235 = vlaneseq
        %v236 = vshrl.u32 %v235, 7
        %v237 = vcvt.s32.f32 %v236
        %v238 = vld [vmem:[%s222] sm:$0x7]
        %v239 = vld [vmem:[%s227] sm:$0xf]
        %v240 = vmul.f32 %v239, 0.5
        %v242 = vrot.slane %v240, 2
        %v244 = vsub.f32 %v239, %v242
        %v245 = vadd.f32 %v239, %v242
        %v246 = vsub.f32 %v245, %v244
        %v248 = vrot.slane %v246, 1
        %v250 = vmul.f32 %v246, %v248
        %vm251 = vcmask 59392
        %v252 = vsel %vm251, %v238, -inf
        %v253 = vrot.slane %v252, 4
        %v254 = vmax.f32 %v252, %v253
        %v255 = vrot.slane %v254, 2
        %v256 = vmax.f32 %v254, %v255
        %v257 = vrot.slane %v256, 1
        %v258 = vmax.f32 %v256, %v257
        %v259 = vsub.f32 %v238, %v258
        %v260 = vmul.f32 %v259, 1.442695
        %v261 = vpow.pop %v260
        %v262 = vsel %vm251, %v261, 0.0
        %v263 = vrot.slane %v262, 4
        %v264 = vadd.f32 %v262, %v263
        %v265 = vrot.slane %v264, 2
        %v266 = vadd.f32 %v264, %v265
        %v267 = vrot.slane %v266, 1
        %v268 = vadd.f32 %v266, %v267
        %v269 = vlog2.pop %v268
        %v270 = vmul.f32 %v269, 0.6931472
        %v271 = vadd.f32 %v258, %v270
        %v272 = vrcp.pop %v268
        %s273 = sld [smem:[#allocation3]]
        %p274 = scmp.lt.s32.totalorder %s273, 8
        %s275 = scalar_select %p274, %s273, 8
        %p276 = scmp.gt.s32.totalorder %s275, 0
        %s277 = scalar_select %p276, 1, 0
        %s278 = scvt.s32.f32 %s277
        %s279 = sld [smem:[#allocation4]]
        %s280 = sld [smem:[#allocation6]]
        %s281 = sld [smem:[#allocation6 + $0x1]]
        %s282 = sld [smem:[#allocation6 + $0x2]]
        %s283 = sld [smem:[#allocation6 + $0x3]]
        %v284 = vstv %s279
        %vm285 = vcmp.eq.s32.totalorder %v236, %v284
        %v286 = vsel %vm285, 1, 0
        %v287 = vcvt.s32.f32 %v286
        %v288 = vmul.f32 %v238, %v287
        %v289 = vsel %vm251, %v288, 0.0
        %v290 = vrot.slane %v289, 4
        %v291 = vadd.f32 %v289, %v290
        %v292 = vrot.slane %v291, 2
        %v293 = vadd.f32 %v291, %v292
        %v294 = vrot.slane %v293, 1
        %v295 = vadd.f32 %v293, %v294
        %v296 = vmul.f32 %v261, %v287
        %v297 = vsel %vm251, %v296, 0.0
        %v298 = vrot.slane %v297, 4
        %v299 = vadd.f32 %v297, %v298
        %v300 = vrot.slane %v299, 2
        %v301 = vadd.f32 %v299, %v300
        %v302 = vrot.slane %v301, 1
        %v303 = vadd.f32 %v301, %v302
        %v304 = vmul.f32 %v303, %v272
        %v305 = vstv %s280
        %v306 = vsub.f32 %v239, %v305
        %v307 = vand.u32 2147483647, %v306
        %v308 = vstv %s281
        %v309 = vsub.f32 %v239, %v308
        %v310 = vand.u32 2147483647, %v309
        %v312 = vrot.slane %v310, 1
        %v314 = vadd.f32 %v307, %v312
        %v315 = vstv %s282
        %v316 = vsub.f32 %v239, %v315
        %v317 = vand.u32 2147483647, %v316
        %v319 = vrot.slane %v317, 2
        %v321 = vadd.f32 %v314, %v319
        %v322 = vstv %s283
        %v323 = vsub.f32 %v239, %v322
        %v324 = vand.u32 2147483647, %v323
        %v326 = vrot.slane %v324, 3
        %v328 = vadd.f32 %v321, %v326
        %s329 = smul.f32 %s282, 0.5
        %s330 = ssub.f32 %s280, %s329
        %s331 = smul.f32 %s283, 0.5
        %s332 = ssub.f32 %s281, %s331
        %s333 = sadd.f32 %s280, %s329
        %s334 = sadd.f32 %s281, %s331
        %s335 = ssub.f32 %s333, %s330
        %s336 = ssub.f32 %s334, %s332
        %s337 = smul.f32 %s335, %s336
        %v338 = vstv %s333
        %v339 = vmin.f32 %v245, %v338
        %v340 = vstv %s330
        %v341 = vmax.f32 %v244, %v340
        %v342 = vsub.f32 %v339, %v341
        %v343 = vmax.f32 %v342, 0.0
        %v344 = vstv %s334
        %v345 = vmin.f32 %v245, %v344
        %v346 = vstv %s332
        %v347 = vmax.f32 %v244, %v346
        %v348 = vsub.f32 %v345, %v347
        %v349 = vmax.f32 %v348, 0.0
        %v351 = vrot.slane %v349, 1
        %v353 = vmul.f32 %v343, %v351
        %v354 = vstv %s337
        %v355 = vadd.f32 %v250, %v354
        %v356 = vsub.f32 %v355, %v353
        %v357 = vmax.f32 %v356, 1e-12
        %v358 = vmax.f32 %v245, %v338
        %v359 = vmin.f32 %v244, %v340
        %v360 = vsub.f32 %v358, %v359
        %v361 = vmax.f32 %v245, %v344
        %v362 = vmin.f32 %v244, %v346
        %v363 = vsub.f32 %v361, %v362
        %v365 = vrot.slane %v363, 1
        %v367 = vmul.f32 %v360, %v365
        %v368 = vmax.f32 %v367, 1e-12
        %v369 = vrcp.pop %v357
        %v370 = vmul.f32 %v357, %v369
        %v371 = vsub.f32 1.0, %v370
        %v372 = vmul.f32 %v369, %v371
        %v373 = vadd.f32 %v369, %v372
        %vm374 = vweird.f32 %v357
        %vm375 = vweird.f32 %v369
        %vm376 = vmor %vm374, %vm375
        %v377 = vsel %vm376, %v369, %v373
        %v378 = vand.u32 2147483647, %v357
        %vm379 = vcmp.eq.f32.partialorder %v378, 8.507059e+37
        %v380 = vand.u32 %v357, 2147483648
        %v381 = vor.u32 1.1754944e-38, %v380
        %v382 = vsel %vm379, %v381, %v377
        %v383 = vmul.f32 %v353, %v382
        %v384 = vsub.f32 %v368, %v357
        %v385 = vrcp.pop %v368
        %v386 = vmul.f32 %v368, %v385
        %v387 = vsub.f32 1.0, %v386
        %v388 = vmul.f32 %v385, %v387
        %v389 = vadd.f32 %v385, %v388
        %vm390 = vweird.f32 %v368
        %vm391 = vweird.f32 %v385
        %vm392 = vmor %vm390, %vm391
        %v393 = vsel %vm392, %v385, %v389
        %v394 = vand.u32 2147483647, %v368
        %vm395 = vcmp.eq.f32.partialorder %v394, 8.507059e+37
        %v396 = vand.u32 %v368, 2147483648
        %v397 = vor.u32 1.1754944e-38, %v396
        %v398 = vsel %vm395, %v397, %v393
        %v399 = vmul.f32 %v384, %v398
        %v400 = vsub.f32 %v383, %v399
        %v401 = vsub.f32 0.0, %v304
        %v402 = vmul.f32 %v328, 5.0
        %v403 = vadd.f32 %v401, %v402
        %v404 = vmul.f32 %v400, 2.0
        %v405 = vsub.f32 %v403, %v404
        %v406 = vadd.f32 %v405, 0.0
        %vm407 = vcmask 57344
        %v408 = vsel %vm407, %v406, inf
        %409 = vmin.xlane.f32.xlu0 %v408
        %v410 = vpop.xlane.xlu0 %409
        %vm411 = vcmp.le.f32.partialorder %v406, %v410
        %v412 = vsel %vm411, %v234, 8.0
        %v413 = vsel %vm407, %v412, inf
        %414 = vmin.xlane.f32.xlu0 %v413
        %v415 = vpop.xlane.xlu0 %414
        %vm416 = vcmp.eq.f32.partialorder %v234, %v415
        %v417 = vsel %vm416, 1, 0
        %v418 = vcvt.s32.f32 %v417
        %v419 = vstv %s278
        %v420 = vmul.f32 %v418, %v419
        %v421 = vmul.f32 %v420, 1e+09
        %v422 = vadd.f32 %v421, 0.0
        %v423 = vadd.f32 %v420, 0.0
        %v424 = vmul.f32 %v420, %v295
        %v425 = vadd.f32 %v424, 0.0
        %s426 = scvt.s32.f32 %s279
        %v427 = vstv %s426
        %v428 = vmul.f32 %v420, %v427
        %v429 = vadd.f32 %v428, 0.0
        %v430 = vmul.f32 %v420, %v305
        %v431 = vadd.f32 %v430, 0.0
        %v432 = vmul.f32 %v420, %v308
        %v433 = vadd.f32 %v432, 0.0
        %v434 = vmul.f32 %v420, %v315
        %v435 = vadd.f32 %v434, 0.0
        %v436 = vmul.f32 %v420, %v322
        %v437 = vadd.f32 %v436, 0.0
        %p438 = scmp.gt.s32.totalorder %s275, 1
        %s439 = scalar_select %p438, 1, 0
        %s440 = scvt.s32.f32 %s439
        %s441 = sld [smem:[#allocation4 + $0x1]]
        %s442 = sld [smem:[#allocation6 + $0x4]]
        %s443 = sld [smem:[#allocation6 + $0x5]]
        %s444 = sld [smem:[#allocation6 + $0x6]]
        %s445 = sld [smem:[#allocation6 + $0x7]]
        %v446 = vstv %s441
        %vm447 = vcmp.eq.s32.totalorder %v236, %v446
        %v448 = vsel %vm447, 1, 0
        %v449 = vcvt.s32.f32 %v448
        %v450 = vmul.f32 %v238, %v449
        %v451 = vsel %vm251, %v450, 0.0
        %v452 = vrot.slane %v451, 4
        %v453 = vadd.f32 %v451, %v452
        %v454 = vrot.slane %v453, 2
        %v455 = vadd.f32 %v453, %v454
        %v456 = vrot.slane %v455, 1
        %v457 = vadd.f32 %v455, %v456
        %v458 = vmul.f32 %v261, %v449
        %v459 = vsel %vm251, %v458, 0.0
        %v460 = vrot.slane %v459, 4
        %v461 = vadd.f32 %v459, %v460
        %v462 = vrot.slane %v461, 2
        %v463 = vadd.f32 %v461, %v462
        %v464 = vrot.slane %v463, 1
        %v465 = vadd.f32 %v463, %v464
        %v466 = vmul.f32 %v465, %v272
        %v467 = vstv %s442
        %v468 = vsub.f32 %v239, %v467
        %v469 = vand.u32 2147483647, %v468
        %v470 = vstv %s443
        %v471 = vsub.f32 %v239, %v470
        %v472 = vand.u32 2147483647, %v471
        %v474 = vrot.slane %v472, 1
        %v476 = vadd.f32 %v469, %v474
        %v477 = vstv %s444
        %v478 = vsub.f32 %v239, %v477
        %v479 = vand.u32 2147483647, %v478
        %v481 = vrot.slane %v479, 2
        %v483 = vadd.f32 %v476, %v481
        %v484 = vstv %s445
        %v485 = vsub.f32 %v239, %v484
        %v486 = vand.u32 2147483647, %v485
        %v488 = vrot.slane %v486, 3
        %v490 = vadd.f32 %v483, %v488
        %s491 = smul.f32 %s444, 0.5
        %s492 = ssub.f32 %s442, %s491
        %s493 = smul.f32 %s445, 0.5
        %s494 = ssub.f32 %s443, %s493
        %s495 = sadd.f32 %s442, %s491
        %s496 = sadd.f32 %s443, %s493
        %s497 = ssub.f32 %s495, %s492
        %s498 = ssub.f32 %s496, %s494
        %s499 = smul.f32 %s497, %s498
        %v500 = vstv %s495
        %v501 = vmin.f32 %v245, %v500
        %v502 = vstv %s492
        %v503 = vmax.f32 %v244, %v502
        %v504 = vsub.f32 %v501, %v503
        %v505 = vmax.f32 %v504, 0.0
        %v506 = vstv %s496
        %v507 = vmin.f32 %v245, %v506
        %v508 = vstv %s494
        %v509 = vmax.f32 %v244, %v508
        %v510 = vsub.f32 %v507, %v509
        %v511 = vmax.f32 %v510, 0.0
        %v513 = vrot.slane %v511, 1
        %v515 = vmul.f32 %v505, %v513
        %v516 = vstv %s499
        %v517 = vadd.f32 %v250, %v516
        %v518 = vsub.f32 %v517, %v515
        %v519 = vmax.f32 %v518, 1e-12
        %v520 = vmax.f32 %v245, %v500
        %v521 = vmin.f32 %v244, %v502
        %v522 = vsub.f32 %v520, %v521
        %v523 = vmax.f32 %v245, %v506
        %v524 = vmin.f32 %v244, %v508
        %v525 = vsub.f32 %v523, %v524
        %v527 = vrot.slane %v525, 1
        %v529 = vmul.f32 %v522, %v527
        %v530 = vmax.f32 %v529, 1e-12
        %v531 = vrcp.pop %v519
        %v532 = vmul.f32 %v519, %v531
        %v533 = vsub.f32 1.0, %v532
        %v534 = vmul.f32 %v531, %v533
        %v535 = vadd.f32 %v531, %v534
        %vm536 = vweird.f32 %v519
        %vm537 = vweird.f32 %v531
        %vm538 = vmor %vm536, %vm537
        %v539 = vsel %vm538, %v531, %v535
        %v540 = vand.u32 2147483647, %v519
        %vm541 = vcmp.eq.f32.partialorder %v540, 8.507059e+37
        %v542 = vand.u32 %v519, 2147483648
        %v543 = vor.u32 1.1754944e-38, %v542
        %v544 = vsel %vm541, %v543, %v539
        %v545 = vmul.f32 %v515, %v544
        %v546 = vsub.f32 %v530, %v519
        %v547 = vrcp.pop %v530
        %v548 = vmul.f32 %v530, %v547
        %v549 = vsub.f32 1.0, %v548
        %v550 = vmul.f32 %v547, %v549
        %v551 = vadd.f32 %v547, %v550
        %vm552 = vweird.f32 %v530
        %vm553 = vweird.f32 %v547
        %vm554 = vmor %vm552, %vm553
        %v555 = vsel %vm554, %v547, %v551
        %v556 = vand.u32 2147483647, %v530
        %vm557 = vcmp.eq.f32.partialorder %v556, 8.507059e+37
        %v558 = vand.u32 %v530, 2147483648
        %v559 = vor.u32 1.1754944e-38, %v558
        %v560 = vsel %vm557, %v559, %v555
        %v561 = vmul.f32 %v546, %v560
        %v562 = vsub.f32 %v545, %v561
        %v563 = vsub.f32 0.0, %v466
        %v564 = vmul.f32 %v490, 5.0
        %v565 = vadd.f32 %v563, %v564
        %v566 = vmul.f32 %v562, 2.0
        %v567 = vsub.f32 %v565, %v566
        %v568 = vadd.f32 %v567, %v422
        %v569 = vsel %vm407, %v568, inf
        %570 = vmin.xlane.f32.xlu0 %v569
        %v571 = vpop.xlane.xlu0 %570
        %vm572 = vcmp.le.f32.partialorder %v568, %v571
        %v573 = vsel %vm572, %v234, 8.0
        %v574 = vsel %vm407, %v573, inf
        %575 = vmin.xlane.f32.xlu0 %v574
        %v576 = vpop.xlane.xlu0 %575
        %vm577 = vcmp.eq.f32.partialorder %v234, %v576
        %v578 = vsel %vm577, 1, 0
        %v579 = vcvt.s32.f32 %v578
        %v580 = vstv %s440
        %v581 = vmul.f32 %v579, %v580
        %v582 = vadd.f32 %v423, %v581
        %v583 = vmul.f32 %v581, %v457
        %v584 = vadd.f32 %v425, %v583
        %s585 = scvt.s32.f32 %s441
        %v586 = vstv %s585
        %v587 = vmul.f32 %v581, %v586
        %v588 = vadd.f32 %v429, %v587
        %v589 = vmul.f32 %v581, %v467
        %v590 = vadd.f32 %v431, %v589
        %v591 = vmul.f32 %v581, %v470
        %v592 = vadd.f32 %v433, %v591
        %v593 = vmul.f32 %v581, %v477
        %v594 = vadd.f32 %v435, %v593
        %v595 = vmul.f32 %v581, %v484
        %v596 = vadd.f32 %v437, %v595
        %v597 = vmul.f32 %v582, %v584
        %v598 = vsub.f32 1.0, %v582
        %v600 = vrot.slane %v238, 2
        %v602 = vmul.f32 %v598, %v600
        %v603 = vadd.f32 %v597, %v602
        %v604 = vmul.f32 %v598, 0.1
        %v605 = vadd.f32 %v582, %v604
        %v606 = vsub.f32 %v271, %v603
        %v607 = vmul.f32 %v605, %v606
        %v608 = vsel %vm407, %v607, 0.0
        %609 = vadd.xlane.f32.xlu0 %v608
        %v610 = vpop.xlane.xlu0 %609
        %v611 = vadd.f32 %v610, 0.0
        %v612 = vsel %vm407, %v605, 0.0
        %613 = vadd.xlane.f32.xlu0 %v612
        %v614 = vpop.xlane.xlu0 %613
        %v615 = vadd.f32 %v614, 0.0
        %vm616 = vcmp.ge.f32.partialorder %v238, %v258
        %v617 = vsel %vm616, %v237, 3.0
        %v618 = vsel %vm251, %v617, inf
        %v619 = vrot.slane %v618, 4
        %v620 = vmin.f32 %v618, %v619
        %v621 = vrot.slane %v620, 2
        %v622 = vmin.f32 %v620, %v621
        %v623 = vrot.slane %v622, 1
        %v624 = vmin.f32 %v622, %v623
        %vm625 = vcmp.eq.f32.partialorder %v624, %v588
        %v626 = vsel %vm625, 1, 0
        %v627 = vcvt.s32.f32 %v626
        %v628 = vmul.f32 %v627, %v582
        %v629 = vsel %vm407, %v628, 0.0
        %630 = vadd.xlane.f32.xlu0 %v629
        %v631 = vpop.xlane.xlu0 %630
        %v632 = vadd.f32 %v631, 0.0
        %v633 = vsel %vm407, %v582, 0.0
        %634 = vadd.xlane.f32.xlu0 %v633
        %v635 = vpop.xlane.xlu0 %634
        %v636 = vadd.f32 %v635, 0.0
        %v637 = vld [vmem:[%s231] sm:$0x1]
        %vm638 = vcmask 8192
        %v639 = vsel %vm638, %v637, -inf
        %640 = vmax.xlane.f32.xlu0 %v639
        %v641 = vpop.xlane.xlu0 %640
        %v642 = vsub.f32 %v637, %v641
        %v643 = vmul.f32 %v642, 1.442695
        %v644 = vpow.pop %v643
        %v645 = vsel %vm638, %v644, 0.0
        %646 = vadd.xlane.f32.xlu0 %v645
        %v647 = vpop.xlane.xlu0 %646
        %v648 = vlog2.pop %v647
        %v649 = vmul.f32 %v648, 0.6931472
        %v650 = vadd.f32 %v641, %v649
        %s651 = sld [smem:[#allocation5]]
        %v652 = vstv %s651
        %vm653 = vcmp.eq.s32.totalorder %v233, %v652
        %v654 = vsel %vm653, 1, 0
        %v655 = vcvt.s32.f32 %v654
        %v656 = vadd.f32 %v650, 0.0
        %v657 = vmul.f32 %v637, %v655
        %v658 = vsel %vm638, %v657, 0.0
        %659 = vadd.xlane.f32.xlu0 %v658
        %v660 = vpop.xlane.xlu0 %659
        %v661 = vsub.f32 %v656, %v660
        %v662 = vsub.f32 %v239, %v590
        %v663 = vand.u32 2147483647, %v662
        %v665 = vrot.slane %v592, 7
        %v667 = vsub.f32 %v239, %v665
        %v668 = vand.u32 2147483647, %v667
        %v670 = vrot.slane %v668, 1
        %v672 = vadd.f32 %v663, %v670
        %v674 = vrot.slane %v594, 6
        %v676 = vsub.f32 %v239, %v674
        %v677 = vand.u32 2147483647, %v676
        %v679 = vrot.slane %v677, 2
        %v681 = vadd.f32 %v672, %v679
        %v683 = vrot.slane %v596, 5
        %v685 = vsub.f32 %v239, %v683
        %v686 = vand.u32 2147483647, %v685
        %v688 = vrot.slane %v686, 3
        %v690 = vadd.f32 %v681, %v688
        %v691 = vmul.f32 %v690, %v582
        %v692 = vsel %vm407, %v691, 0.0
        %693 = vadd.xlane.f32.xlu0 %v692
        %v694 = vpop.xlane.xlu0 %693
        %v695 = vadd.f32 %v694, 0.0
        %v696 = vmul.f32 %v594, 0.5
        %v697 = vsub.f32 %v590, %v696
        %v698 = vmul.f32 %v596, 0.5
        %v699 = vsub.f32 %v592, %v698
        %v700 = vadd.f32 %v590, %v696
        %v701 = vadd.f32 %v592, %v698
        %v702 = vsub.f32 %v700, %v697
        %v703 = vsub.f32 %v701, %v699
        %v704 = vmul.f32 %v702, %v703
        %v705 = vmin.f32 %v245, %v700
        %v706 = vmax.f32 %v244, %v697
        %v707 = vsub.f32 %v705, %v706
        %v708 = vmax.f32 %v707, 0.0
        %v710 = vrot.slane %v701, 7
        %v712 = vmin.f32 %v245, %v710
        %v714 = vrot.slane %v699, 7
        %v716 = vmax.f32 %v244, %v714
        %v717 = vsub.f32 %v712, %v716
        %v718 = vmax.f32 %v717, 0.0
        %v720 = vrot.slane %v718, 1
        %v722 = vmul.f32 %v708, %v720
        %v723 = vadd.f32 %v250, %v704
        %v724 = vsub.f32 %v723, %v722
        %v725 = vmax.f32 %v245, %v700
        %v726 = vmin.f32 %v244, %v697
        %v727 = vsub.f32 %v725, %v726
        %v728 = vmax.f32 %v245, %v710
        %v729 = vmin.f32 %v244, %v714
        %v730 = vsub.f32 %v728, %v729
        %v732 = vrot.slane %v730, 1
        %v734 = vmul.f32 %v727, %v732
        %vm735 = vcmp.gt.f32.partialorder %v582, 0.0
        %v736 = vmax.f32 %v724, 1e-12
        %v737 = vsel %vm735, %v736, 1.0
        %v738 = vmax.f32 %v734, 1e-12
        %v739 = vsel %vm735, %v738, 1.0
        %v740 = vrcp.pop %v737
        %v741 = vmul.f32 %v737, %v740
        %v742 = vsub.f32 1.0, %v741
        %v743 = vmul.f32 %v740, %v742
        %v744 = vadd.f32 %v740, %v743
        %vm745 = vweird.f32 %v737
        %vm746 = vweird.f32 %v740
        %vm747 = vmor %vm745, %vm746
        %v748 = vsel %vm747, %v740, %v744
        %v749 = vand.u32 2147483647, %v737
        %vm750 = vcmp.eq.f32.partialorder %v749, 8.507059e+37
        %v751 = vand.u32 %v737, 2147483648
        %v752 = vor.u32 1.1754944e-38, %v751
        %v753 = vsel %vm750, %v752, %v748
        %v754 = vmul.f32 %v722, %v753
        %v755 = vsub.f32 %v734, %v724
        %v756 = vrcp.pop %v739
        %v757 = vmul.f32 %v739, %v756
        %v758 = vsub.f32 1.0, %v757
        %v759 = vmul.f32 %v756, %v758
        %v760 = vadd.f32 %v756, %v759
        %vm761 = vweird.f32 %v739
        %vm762 = vweird.f32 %v756
        %vm763 = vmor %vm761, %vm762
        %v764 = vsel %vm763, %v756, %v760
        %v765 = vand.u32 2147483647, %v739
        %vm766 = vcmp.eq.f32.partialorder %v765, 8.507059e+37
        %v767 = vand.u32 %v739, 2147483648
        %v768 = vor.u32 1.1754944e-38, %v767
        %v769 = vsel %vm766, %v768, %v764
        %v770 = vmul.f32 %v755, %v769
        %v771 = vsub.f32 %v754, %v770
        %v772 = vsub.f32 1.0, %v771
        %v773 = vmul.f32 %v772, %v582
        %v774 = vsel %vm407, %v773, 0.0
        %775 = vadd.xlane.f32.xlu0 %v774
        %v776 = vpop.xlane.xlu0 %775
        %v777 = vadd.f32 %v776, 0.0
        %s778 = scalar_lea.vmem %s222, 4
        %v779 = vld [vmem:[%s778] sm:$0x7]
        %s780 = scalar_lea.vmem %s227, 4
        %v781 = vld [vmem:[%s780] sm:$0xf]
        %v782 = vmul.f32 %v781, 0.5
        %v784 = vrot.slane %v782, 2
        %v786 = vsub.f32 %v781, %v784
        %v787 = vadd.f32 %v781, %v784
        %v788 = vsub.f32 %v787, %v786
        %v790 = vrot.slane %v788, 1
        %v792 = vmul.f32 %v788, %v790
        %v793 = vsel %vm251, %v779, -inf
        %v794 = vrot.slane %v793, 4
        %v795 = vmax.f32 %v793, %v794
        %v796 = vrot.slane %v795, 2
        %v797 = vmax.f32 %v795, %v796
        %v798 = vrot.slane %v797, 1
        %v799 = vmax.f32 %v797, %v798
        %v800 = vsub.f32 %v779, %v799
        %v801 = vmul.f32 %v800, 1.442695
        %v802 = vpow.pop %v801
        %v803 = vsel %vm251, %v802, 0.0
        %v804 = vrot.slane %v803, 4
        %v805 = vadd.f32 %v803, %v804
        %v806 = vrot.slane %v805, 2
        %v807 = vadd.f32 %v805, %v806
        %v808 = vrot.slane %v807, 1
        %v809 = vadd.f32 %v807, %v808
        %v810 = vlog2.pop %v809
        %v811 = vmul.f32 %v810, 0.6931472
        %v812 = vadd.f32 %v799, %v811
        %v813 = vrcp.pop %v809
        %s814 = sld [smem:[#allocation3 + $0x1]]
        %p815 = scmp.lt.s32.totalorder %s814, 8
        %s816 = scalar_select %p815, %s814, 8
        %p817 = scmp.gt.s32.totalorder %s816, 0
        %s818 = scalar_select %p817, 1, 0
        %s819 = scvt.s32.f32 %s818
        %s820 = sld [smem:[#allocation4 + $0x2]]
        %s821 = sld [smem:[#allocation6 + $0x8]]
        %s822 = sld [smem:[#allocation6 + $0x9]]
        %s823 = sld [smem:[#allocation6 + $0xa]]
        %s824 = sld [smem:[#allocation6 + $0xb]]
        %v825 = vstv %s820
        %vm826 = vcmp.eq.s32.totalorder %v236, %v825
        %v827 = vsel %vm826, 1, 0
        %v828 = vcvt.s32.f32 %v827
        %v829 = vmul.f32 %v779, %v828
        %v830 = vsel %vm251, %v829, 0.0
        %v831 = vrot.slane %v830, 4
        %v832 = vadd.f32 %v830, %v831
        %v833 = vrot.slane %v832, 2
        %v834 = vadd.f32 %v832, %v833
        %v835 = vrot.slane %v834, 1
        %v836 = vadd.f32 %v834, %v835
        %v837 = vmul.f32 %v802, %v828
        %v838 = vsel %vm251, %v837, 0.0
        %v839 = vrot.slane %v838, 4
        %v840 = vadd.f32 %v838, %v839
        %v841 = vrot.slane %v840, 2
        %v842 = vadd.f32 %v840, %v841
        %v843 = vrot.slane %v842, 1
        %v844 = vadd.f32 %v842, %v843
        %v845 = vmul.f32 %v844, %v813
        %v846 = vstv %s821
        %v847 = vsub.f32 %v781, %v846
        %v848 = vand.u32 2147483647, %v847
        %v849 = vstv %s822
        %v850 = vsub.f32 %v781, %v849
        %v851 = vand.u32 2147483647, %v850
        %v853 = vrot.slane %v851, 1
        %v855 = vadd.f32 %v848, %v853
        %v856 = vstv %s823
        %v857 = vsub.f32 %v781, %v856
        %v858 = vand.u32 2147483647, %v857
        %v860 = vrot.slane %v858, 2
        %v862 = vadd.f32 %v855, %v860
        %v863 = vstv %s824
        %v864 = vsub.f32 %v781, %v863
        %v865 = vand.u32 2147483647, %v864
        %v867 = vrot.slane %v865, 3
        %v869 = vadd.f32 %v862, %v867
        %s870 = smul.f32 %s823, 0.5
        %s871 = ssub.f32 %s821, %s870
        %s872 = smul.f32 %s824, 0.5
        %s873 = ssub.f32 %s822, %s872
        %s874 = sadd.f32 %s821, %s870
        %s875 = sadd.f32 %s822, %s872
        %s876 = ssub.f32 %s874, %s871
        %s877 = ssub.f32 %s875, %s873
        %s878 = smul.f32 %s876, %s877
        %v879 = vstv %s874
        %v880 = vmin.f32 %v787, %v879
        %v881 = vstv %s871
        %v882 = vmax.f32 %v786, %v881
        %v883 = vsub.f32 %v880, %v882
        %v884 = vmax.f32 %v883, 0.0
        %v885 = vstv %s875
        %v886 = vmin.f32 %v787, %v885
        %v887 = vstv %s873
        %v888 = vmax.f32 %v786, %v887
        %v889 = vsub.f32 %v886, %v888
        %v890 = vmax.f32 %v889, 0.0
        %v892 = vrot.slane %v890, 1
        %v894 = vmul.f32 %v884, %v892
        %v895 = vstv %s878
        %v896 = vadd.f32 %v792, %v895
        %v897 = vsub.f32 %v896, %v894
        %v898 = vmax.f32 %v897, 1e-12
        %v899 = vmax.f32 %v787, %v879
        %v900 = vmin.f32 %v786, %v881
        %v901 = vsub.f32 %v899, %v900
        %v902 = vmax.f32 %v787, %v885
        %v903 = vmin.f32 %v786, %v887
        %v904 = vsub.f32 %v902, %v903
        %v906 = vrot.slane %v904, 1
        %v908 = vmul.f32 %v901, %v906
        %v909 = vmax.f32 %v908, 1e-12
        %v910 = vrcp.pop %v898
        %v911 = vmul.f32 %v898, %v910
        %v912 = vsub.f32 1.0, %v911
        %v913 = vmul.f32 %v910, %v912
        %v914 = vadd.f32 %v910, %v913
        %vm915 = vweird.f32 %v898
        %vm916 = vweird.f32 %v910
        %vm917 = vmor %vm915, %vm916
        %v918 = vsel %vm917, %v910, %v914
        %v919 = vand.u32 2147483647, %v898
        %vm920 = vcmp.eq.f32.partialorder %v919, 8.507059e+37
        %v921 = vand.u32 %v898, 2147483648
        %v922 = vor.u32 1.1754944e-38, %v921
        %v923 = vsel %vm920, %v922, %v918
        %v924 = vmul.f32 %v894, %v923
        %v925 = vsub.f32 %v909, %v898
        %v926 = vrcp.pop %v909
        %v927 = vmul.f32 %v909, %v926
        %v928 = vsub.f32 1.0, %v927
        %v929 = vmul.f32 %v926, %v928
        %v930 = vadd.f32 %v926, %v929
        %vm931 = vweird.f32 %v909
        %vm932 = vweird.f32 %v926
        %vm933 = vmor %vm931, %vm932
        %v934 = vsel %vm933, %v926, %v930
        %v935 = vand.u32 2147483647, %v909
        %vm936 = vcmp.eq.f32.partialorder %v935, 8.507059e+37
        %v937 = vand.u32 %v909, 2147483648
        %v938 = vor.u32 1.1754944e-38, %v937
        %v939 = vsel %vm936, %v938, %v934
        %v940 = vmul.f32 %v925, %v939
        %v941 = vsub.f32 %v924, %v940
        %v942 = vsub.f32 0.0, %v845
        %v943 = vmul.f32 %v869, 5.0
        %v944 = vadd.f32 %v942, %v943
        %v945 = vmul.f32 %v941, 2.0
        %v946 = vsub.f32 %v944, %v945
        %v947 = vadd.f32 %v946, 0.0
        %v948 = vsel %vm407, %v947, inf
        %949 = vmin.xlane.f32.xlu0 %v948
        %v950 = vpop.xlane.xlu0 %949
        %vm951 = vcmp.le.f32.partialorder %v947, %v950
        %v952 = vsel %vm951, %v234, 8.0
        %v953 = vsel %vm407, %v952, inf
        %954 = vmin.xlane.f32.xlu0 %v953
        %v955 = vpop.xlane.xlu0 %954
        %vm956 = vcmp.eq.f32.partialorder %v234, %v955
        %v957 = vsel %vm956, 1, 0
        %v958 = vcvt.s32.f32 %v957
        %v959 = vstv %s819
        %v960 = vmul.f32 %v958, %v959
        %v961 = vmul.f32 %v960, 1e+09
        %v962 = vadd.f32 %v961, 0.0
        %v963 = vadd.f32 %v960, 0.0
        %v964 = vmul.f32 %v960, %v836
        %v965 = vadd.f32 %v964, 0.0
        %s966 = scvt.s32.f32 %s820
        %v967 = vstv %s966
        %v968 = vmul.f32 %v960, %v967
        %v969 = vadd.f32 %v968, 0.0
        %v970 = vmul.f32 %v960, %v846
        %v971 = vadd.f32 %v970, 0.0
        %v972 = vmul.f32 %v960, %v849
        %v973 = vadd.f32 %v972, 0.0
        %v974 = vmul.f32 %v960, %v856
        %v975 = vadd.f32 %v974, 0.0
        %v976 = vmul.f32 %v960, %v863
        %v977 = vadd.f32 %v976, 0.0
        %p978 = scmp.gt.s32.totalorder %s816, 1
        %s979 = scalar_select %p978, 1, 0
        %s980 = scvt.s32.f32 %s979
        %s981 = sld [smem:[#allocation4 + $0x3]]
        %s982 = sld [smem:[#allocation6 + $0xc]]
        %s983 = sld [smem:[#allocation6 + $0xd]]
        %s984 = sld [smem:[#allocation6 + $0xe]]
        %s985 = sld [smem:[#allocation6 + $0xf]]
        %v986 = vstv %s981
        %vm987 = vcmp.eq.s32.totalorder %v236, %v986
        %v988 = vsel %vm987, 1, 0
        %v989 = vcvt.s32.f32 %v988
        %v990 = vmul.f32 %v779, %v989
        %v991 = vsel %vm251, %v990, 0.0
        %v992 = vrot.slane %v991, 4
        %v993 = vadd.f32 %v991, %v992
        %v994 = vrot.slane %v993, 2
        %v995 = vadd.f32 %v993, %v994
        %v996 = vrot.slane %v995, 1
        %v997 = vadd.f32 %v995, %v996
        %v998 = vmul.f32 %v802, %v989
        %v999 = vsel %vm251, %v998, 0.0
        %v1000 = vrot.slane %v999, 4
        %v1001 = vadd.f32 %v999, %v1000
        %v1002 = vrot.slane %v1001, 2
        %v1003 = vadd.f32 %v1001, %v1002
        %v1004 = vrot.slane %v1003, 1
        %v1005 = vadd.f32 %v1003, %v1004
        %v1006 = vmul.f32 %v1005, %v813
        %v1007 = vstv %s982
        %v1008 = vsub.f32 %v781, %v1007
        %v1009 = vand.u32 2147483647, %v1008
        %v1010 = vstv %s983
        %v1011 = vsub.f32 %v781, %v1010
        %v1012 = vand.u32 2147483647, %v1011
        %v1014 = vrot.slane %v1012, 1
        %v1016 = vadd.f32 %v1009, %v1014
        %v1017 = vstv %s984
        %v1018 = vsub.f32 %v781, %v1017
        %v1019 = vand.u32 2147483647, %v1018
        %v1021 = vrot.slane %v1019, 2
        %v1023 = vadd.f32 %v1016, %v1021
        %v1024 = vstv %s985
        %v1025 = vsub.f32 %v781, %v1024
        %v1026 = vand.u32 2147483647, %v1025
        %v1028 = vrot.slane %v1026, 3
        %v1030 = vadd.f32 %v1023, %v1028
        %s1031 = smul.f32 %s984, 0.5
        %s1032 = ssub.f32 %s982, %s1031
        %s1033 = smul.f32 %s985, 0.5
        %s1034 = ssub.f32 %s983, %s1033
        %s1035 = sadd.f32 %s982, %s1031
        %s1036 = sadd.f32 %s983, %s1033
        %s1037 = ssub.f32 %s1035, %s1032
        %s1038 = ssub.f32 %s1036, %s1034
        %s1039 = smul.f32 %s1037, %s1038
        %v1040 = vstv %s1035
        %v1041 = vmin.f32 %v787, %v1040
        %v1042 = vstv %s1032
        %v1043 = vmax.f32 %v786, %v1042
        %v1044 = vsub.f32 %v1041, %v1043
        %v1045 = vmax.f32 %v1044, 0.0
        %v1046 = vstv %s1036
        %v1047 = vmin.f32 %v787, %v1046
        %v1048 = vstv %s1034
        %v1049 = vmax.f32 %v786, %v1048
        %v1050 = vsub.f32 %v1047, %v1049
        %v1051 = vmax.f32 %v1050, 0.0
        %v1053 = vrot.slane %v1051, 1
        %v1055 = vmul.f32 %v1045, %v1053
        %v1056 = vstv %s1039
        %v1057 = vadd.f32 %v792, %v1056
        %v1058 = vsub.f32 %v1057, %v1055
        %v1059 = vmax.f32 %v1058, 1e-12
        %v1060 = vmax.f32 %v787, %v1040
        %v1061 = vmin.f32 %v786, %v1042
        %v1062 = vsub.f32 %v1060, %v1061
        %v1063 = vmax.f32 %v787, %v1046
        %v1064 = vmin.f32 %v786, %v1048
        %v1065 = vsub.f32 %v1063, %v1064
        %v1067 = vrot.slane %v1065, 1
        %v1069 = vmul.f32 %v1062, %v1067
        %v1070 = vmax.f32 %v1069, 1e-12
        %v1071 = vrcp.pop %v1059
        %v1072 = vmul.f32 %v1059, %v1071
        %v1073 = vsub.f32 1.0, %v1072
        %v1074 = vmul.f32 %v1071, %v1073
        %v1075 = vadd.f32 %v1071, %v1074
        %vm1076 = vweird.f32 %v1059
        %vm1077 = vweird.f32 %v1071
        %vm1078 = vmor %vm1076, %vm1077
        %v1079 = vsel %vm1078, %v1071, %v1075
        %v1080 = vand.u32 2147483647, %v1059
        %vm1081 = vcmp.eq.f32.partialorder %v1080, 8.507059e+37
        %v1082 = vand.u32 %v1059, 2147483648
        %v1083 = vor.u32 1.1754944e-38, %v1082
        %v1084 = vsel %vm1081, %v1083, %v1079
        %v1085 = vmul.f32 %v1055, %v1084
        %v1086 = vsub.f32 %v1070, %v1059
        %v1087 = vrcp.pop %v1070
        %v1088 = vmul.f32 %v1070, %v1087
        %v1089 = vsub.f32 1.0, %v1088
        %v1090 = vmul.f32 %v1087, %v1089
        %v1091 = vadd.f32 %v1087, %v1090
        %vm1092 = vweird.f32 %v1070
        %vm1093 = vweird.f32 %v1087
        %vm1094 = vmor %vm1092, %vm1093
        %v1095 = vsel %vm1094, %v1087, %v1091
        %v1096 = vand.u32 2147483647, %v1070
        %vm1097 = vcmp.eq.f32.partialorder %v1096, 8.507059e+37
        %v1098 = vand.u32 %v1070, 2147483648
        %v1099 = vor.u32 1.1754944e-38, %v1098
        %v1100 = vsel %vm1097, %v1099, %v1095
        %v1101 = vmul.f32 %v1086, %v1100
        %v1102 = vsub.f32 %v1085, %v1101
        %v1103 = vsub.f32 0.0, %v1006
        %v1104 = vmul.f32 %v1030, 5.0
        %v1105 = vadd.f32 %v1103, %v1104
        %v1106 = vmul.f32 %v1102, 2.0
        %v1107 = vsub.f32 %v1105, %v1106
        %v1108 = vadd.f32 %v1107, %v962
        %v1109 = vsel %vm407, %v1108, inf
        %1110 = vmin.xlane.f32.xlu0 %v1109
        %v1111 = vpop.xlane.xlu0 %1110
        %vm1112 = vcmp.le.f32.partialorder %v1108, %v1111
        %v1113 = vsel %vm1112, %v234, 8.0
        %v1114 = vsel %vm407, %v1113, inf
        %1115 = vmin.xlane.f32.xlu0 %v1114
        %v1116 = vpop.xlane.xlu0 %1115
        %vm1117 = vcmp.eq.f32.partialorder %v234, %v1116
        %v1118 = vsel %vm1117, 1, 0
        %v1119 = vcvt.s32.f32 %v1118
        %v1120 = vstv %s980
        %v1121 = vmul.f32 %v1119, %v1120
        %v1122 = vadd.f32 %v963, %v1121
        %v1123 = vmul.f32 %v1121, %v997
        %v1124 = vadd.f32 %v965, %v1123
        %s1125 = scvt.s32.f32 %s981
        %v1126 = vstv %s1125
        %v1127 = vmul.f32 %v1121, %v1126
        %v1128 = vadd.f32 %v969, %v1127
        %v1129 = vmul.f32 %v1121, %v1007
        %v1130 = vadd.f32 %v971, %v1129
        %v1131 = vmul.f32 %v1121, %v1010
        %v1132 = vadd.f32 %v973, %v1131
        %v1133 = vmul.f32 %v1121, %v1017
        %v1134 = vadd.f32 %v975, %v1133
        %v1135 = vmul.f32 %v1121, %v1024
        %v1136 = vadd.f32 %v977, %v1135
        %v1137 = vmul.f32 %v1122, %v1124
        %v1138 = vsub.f32 1.0, %v1122
        %v1140 = vrot.slane %v779, 2
        %v1142 = vmul.f32 %v1138, %v1140
        %v1143 = vadd.f32 %v1137, %v1142
        %v1144 = vmul.f32 %v1138, 0.1
        %v1145 = vadd.f32 %v1122, %v1144
        %v1146 = vsub.f32 %v812, %v1143
        %v1147 = vmul.f32 %v1145, %v1146
        %v1148 = vsel %vm407, %v1147, 0.0
        %1149 = vadd.xlane.f32.xlu0 %v1148
        %v1150 = vpop.xlane.xlu0 %1149
        %v1151 = vadd.f32 %v611, %v1150
        %v1152 = vsel %vm407, %v1145, 0.0
        %1153 = vadd.xlane.f32.xlu0 %v1152
        %v1154 = vpop.xlane.xlu0 %1153
        %v1155 = vadd.f32 %v615, %v1154
        %vm1156 = vcmp.ge.f32.partialorder %v779, %v799
        %v1157 = vsel %vm1156, %v237, 3.0
        %v1158 = vsel %vm251, %v1157, inf
        %v1159 = vrot.slane %v1158, 4
        %v1160 = vmin.f32 %v1158, %v1159
        %v1161 = vrot.slane %v1160, 2
        %v1162 = vmin.f32 %v1160, %v1161
        %v1163 = vrot.slane %v1162, 1
        %v1164 = vmin.f32 %v1162, %v1163
        %vm1165 = vcmp.eq.f32.partialorder %v1164, %v1128
        %v1166 = vsel %vm1165, 1, 0
        %v1167 = vcvt.s32.f32 %v1166
        %v1168 = vmul.f32 %v1167, %v1122
        %v1169 = vsel %vm407, %v1168, 0.0
        %1170 = vadd.xlane.f32.xlu0 %v1169
        %v1171 = vpop.xlane.xlu0 %1170
        %v1172 = vadd.f32 %v632, %v1171
        %v1173 = vsel %vm407, %v1122, 0.0
        %1174 = vadd.xlane.f32.xlu0 %v1173
        %v1175 = vpop.xlane.xlu0 %1174
        %v1176 = vadd.f32 %v636, %v1175
        %v1177 = vld [vmem:[%s231 + $0x1] sm:$0x1]
        %v1178 = vsel %vm638, %v1177, -inf
        %1179 = vmax.xlane.f32.xlu0 %v1178
        %v1180 = vpop.xlane.xlu0 %1179
        %v1181 = vsub.f32 %v1177, %v1180
        %v1182 = vmul.f32 %v1181, 1.442695
        %v1183 = vpow.pop %v1182
        %v1184 = vsel %vm638, %v1183, 0.0
        %1185 = vadd.xlane.f32.xlu0 %v1184
        %v1186 = vpop.xlane.xlu0 %1185
        %v1187 = vlog2.pop %v1186
        %v1188 = vmul.f32 %v1187, 0.6931472
        %v1189 = vadd.f32 %v1180, %v1188
        %s1190 = sld [smem:[#allocation5 + $0x1]]
        %v1191 = vstv %s1190
        %vm1192 = vcmp.eq.s32.totalorder %v233, %v1191
        %v1193 = vsel %vm1192, 1, 0
        %v1194 = vcvt.s32.f32 %v1193
        %v1195 = vadd.f32 %v661, %v1189
        %v1196 = vmul.f32 %v1177, %v1194
        %v1197 = vsel %vm638, %v1196, 0.0
        %1198 = vadd.xlane.f32.xlu0 %v1197
        %v1199 = vpop.xlane.xlu0 %1198
        %v1200 = vsub.f32 %v1195, %v1199
        %v1201 = vsub.f32 %v781, %v1130
        %v1202 = vand.u32 2147483647, %v1201
        %v1204 = vrot.slane %v1132, 7
        %v1206 = vsub.f32 %v781, %v1204
        %v1207 = vand.u32 2147483647, %v1206
        %v1209 = vrot.slane %v1207, 1
        %v1211 = vadd.f32 %v1202, %v1209
        %v1213 = vrot.slane %v1134, 6
        %v1215 = vsub.f32 %v781, %v1213
        %v1216 = vand.u32 2147483647, %v1215
        %v1218 = vrot.slane %v1216, 2
        %v1220 = vadd.f32 %v1211, %v1218
        %v1222 = vrot.slane %v1136, 5
        %v1224 = vsub.f32 %v781, %v1222
        %v1225 = vand.u32 2147483647, %v1224
        %v1227 = vrot.slane %v1225, 3
        %v1229 = vadd.f32 %v1220, %v1227
        %v1230 = vmul.f32 %v1229, %v1122
        %v1231 = vsel %vm407, %v1230, 0.0
        %1232 = vadd.xlane.f32.xlu0 %v1231
        %v1233 = vpop.xlane.xlu0 %1232
        %v1234 = vadd.f32 %v695, %v1233
        %v1235 = vmul.f32 %v1134, 0.5
        %v1236 = vsub.f32 %v1130, %v1235
        %v1237 = vmul.f32 %v1136, 0.5
        %v1238 = vsub.f32 %v1132, %v1237
        %v1239 = vadd.f32 %v1130, %v1235
        %v1240 = vadd.f32 %v1132, %v1237
        %v1241 = vsub.f32 %v1239, %v1236
        %v1242 = vsub.f32 %v1240, %v1238
        %v1243 = vmul.f32 %v1241, %v1242
        %v1244 = vmin.f32 %v787, %v1239
        %v1245 = vmax.f32 %v786, %v1236
        %v1246 = vsub.f32 %v1244, %v1245
        %v1247 = vmax.f32 %v1246, 0.0
        %v1249 = vrot.slane %v1240, 7
        %v1251 = vmin.f32 %v787, %v1249
        %v1253 = vrot.slane %v1238, 7
        %v1255 = vmax.f32 %v786, %v1253
        %v1256 = vsub.f32 %v1251, %v1255
        %v1257 = vmax.f32 %v1256, 0.0
        %v1259 = vrot.slane %v1257, 1
        %v1261 = vmul.f32 %v1247, %v1259
        %v1262 = vadd.f32 %v792, %v1243
        %v1263 = vsub.f32 %v1262, %v1261
        %v1264 = vmax.f32 %v787, %v1239
        %v1265 = vmin.f32 %v786, %v1236
        %v1266 = vsub.f32 %v1264, %v1265
        %v1267 = vmax.f32 %v787, %v1249
        %v1268 = vmin.f32 %v786, %v1253
        %v1269 = vsub.f32 %v1267, %v1268
        %v1271 = vrot.slane %v1269, 1
        %v1273 = vmul.f32 %v1266, %v1271
        %vm1274 = vcmp.gt.f32.partialorder %v1122, 0.0
        %v1275 = vmax.f32 %v1263, 1e-12
        %v1276 = vsel %vm1274, %v1275, 1.0
        %v1277 = vmax.f32 %v1273, 1e-12
        %v1278 = vsel %vm1274, %v1277, 1.0
        %v1279 = vrcp.pop %v1276
        %v1280 = vmul.f32 %v1276, %v1279
        %v1281 = vsub.f32 1.0, %v1280
        %v1282 = vmul.f32 %v1279, %v1281
        %v1283 = vadd.f32 %v1279, %v1282
        %vm1284 = vweird.f32 %v1276
        %vm1285 = vweird.f32 %v1279
        %vm1286 = vmor %vm1284, %vm1285
        %v1287 = vsel %vm1286, %v1279, %v1283
        %v1288 = vand.u32 2147483647, %v1276
        %vm1289 = vcmp.eq.f32.partialorder %v1288, 8.507059e+37
        %v1290 = vand.u32 %v1276, 2147483648
        %v1291 = vor.u32 1.1754944e-38, %v1290
        %v1292 = vsel %vm1289, %v1291, %v1287
        %v1293 = vmul.f32 %v1261, %v1292
        %v1294 = vsub.f32 %v1273, %v1263
        %v1295 = vrcp.pop %v1278
        %v1296 = vmul.f32 %v1278, %v1295
        %v1297 = vsub.f32 1.0, %v1296
        %v1298 = vmul.f32 %v1295, %v1297
        %v1299 = vadd.f32 %v1295, %v1298
        %vm1300 = vweird.f32 %v1278
        %vm1301 = vweird.f32 %v1295
        %vm1302 = vmor %vm1300, %vm1301
        %v1303 = vsel %vm1302, %v1295, %v1299
        %v1304 = vand.u32 2147483647, %v1278
        %vm1305 = vcmp.eq.f32.partialorder %v1304, 8.507059e+37
        %v1306 = vand.u32 %v1278, 2147483648
        %v1307 = vor.u32 1.1754944e-38, %v1306
        %v1308 = vsel %vm1305, %v1307, %v1303
        %v1309 = vmul.f32 %v1294, %v1308
        %v1310 = vsub.f32 %v1293, %v1309
        %v1311 = vsub.f32 1.0, %v1310
        %v1312 = vmul.f32 %v1311, %v1122
        %v1313 = vsel %vm407, %v1312, 0.0
        %1314 = vadd.xlane.f32.xlu0 %v1313
        %v1315 = vpop.xlane.xlu0 %1314
        %v1316 = vadd.f32 %v777, %v1315
        %vm1317 = vcmp.eq.s32.totalorder %v233, 0
        %v1318 = vsel %vm1317, 1, 0
        %v1319 = vcvt.s32.f32 %v1318
        %v1320 = vmul.f32 %v1151, %v1319
        %vm1321 = vcmp.eq.s32.totalorder %v233, 1
        %v1322 = vsel %vm1321, 1, 0
        %v1323 = vcvt.s32.f32 %v1322
        %v1324 = vmul.f32 %v1155, %v1323
        %v1325 = vadd.f32 %v1320, %v1324
        %vm1326 = vcmp.eq.s32.totalorder %v233, 2
        %v1327 = vsel %vm1326, 1, 0
        %v1328 = vcvt.s32.f32 %v1327
        %v1329 = vmul.f32 %v1200, %v1328
        %v1330 = vadd.f32 %v1325, %v1329
        %vm1331 = vcmp.eq.s32.totalorder %v233, 3
        %v1332 = vsel %vm1331, 1, 0
        %v1333 = vcvt.s32.f32 %v1332
        %v1334 = vmul.f32 %v1333, 2.0
        %v1335 = vadd.f32 %v1330, %v1334
        %vm1336 = vcmp.eq.s32.totalorder %v233, 4
        %v1337 = vsel %vm1336, 1, 0
        %v1338 = vcvt.s32.f32 %v1337
        %v1339 = vmul.f32 %v1172, %v1338
        %v1340 = vadd.f32 %v1335, %v1339
        %vm1341 = vcmp.eq.s32.totalorder %v233, 5
        %v1342 = vsel %vm1341, 1, 0
        %v1343 = vcvt.s32.f32 %v1342
        %v1344 = vmul.f32 %v1176, %v1343
        %v1345 = vadd.f32 %v1340, %v1344
        %vm1346 = vcmp.eq.s32.totalorder %v233, 6
        %v1347 = vsel %vm1346, 1, 0
        %v1348 = vcvt.s32.f32 %v1347
        %v1349 = vmul.f32 %v1234, %v1348
        %v1350 = vadd.f32 %v1345, %v1349
        %vm1351 = vcmp.eq.s32.totalorder %v233, 7
        %v1352 = vsel %vm1351, 1, 0
        %v1353 = vcvt.s32.f32 %v1352
        %v1354 = vmul.f32 %v1316, %v1353
        %v1355 = vadd.f32 %v1350, %v1354
        %1356 = vst [vmem:[%s217] sm:$0x1] %v1355
        %s1357 = sand.u32 %s130, 1
        %s1358 = scalar_lea.sflag [#allocation8], %s1357
        %s1359 = sand.u32 %s130, 1
        %s1360 = scalar_lea.vmem [#allocation7], %s1359
        // Predicated region
        $region33: #{tpu_custom_call.1} parent=31 // pred_check
          %p1361 = pneg %p140
        $region34: #{tpu_custom_call.1} parent=31 // pred_check_branch
          %1363 = sbr.rel (%p1361) target = $region36
        $region35: #{tpu_custom_call.1} parent=31 // pred_region
          %1365 = vsyncadd %s1358, 0
          %s1366 = scalar_lea.hbm %s7, %s44
          %s1368 = sshll.u32 %s1360, 4
          %s1369 = int_to_ptr.vmem [resolvable:$true] %s1368
          %s1370 = sshll.u32 %s1366, 4
          %s1371 = int_to_ptr.hbm [resolvable:$true] %s1370
          %1373 = dma.vmem_to_hbm [thread:$0]  %s1369, 16, %s1371, %s1358
        $region36: #{tpu_custom_call.1} parent=31 // pred_fallthru
          _
      $region32: #{tpu_custom_call.1} parent=5 // pred_fallthru
        _
      %p1374 = scmp.le.s32.totalorder 2, %s39
      // Predicated region
      $region37: #{tpu_custom_call.1} parent=5 // pred_check
        %p1375 = pneg %p1374
      $region38: #{tpu_custom_call.1} parent=5 // pred_check_branch
        %1377 = sbr.rel (%p1375) target = $region40
      $region39: #{tpu_custom_call.1} parent=5 // pred_region
        %s1378 = ssub.s32 %s39, 2
        // Predicated region
        $region41: #{tpu_custom_call.1} parent=39 // pred_check
          %p1379 = pneg %p146
        $region42: #{tpu_custom_call.1} parent=39 // pred_check_branch
          %1381 = sbr.rel (%p1379) target = $region44
        $region43: #{tpu_custom_call.1} parent=39 // pred_region
          %s1382 = sand.u32 %s131, 1
          %s1383 = scalar_lea.sflag [#allocation8], %s1382
          %s1384 = sand.u32 %s131, 1
          %s1385 = scalar_lea.vmem [#allocation7], %s1384
          %1387 = dma.done %s1383, 16
        $region44: #{tpu_custom_call.1} parent=39 // pred_fallthru
          _
      $region40: #{tpu_custom_call.1} parent=5 // pred_fallthru
        _
    $region6: #{tpu_custom_call.1} parent=1 // loop_footer
      %s43 = sadd.s32 1, %s39
    $region7: #{tpu_custom_call.1} parent=1 // loop_footer_branch
      %38 = sbr.rel target = $region3
    $region8: #{tpu_custom_call.1} parent=1 // loop_exit
      _
    %1388 = vsyncpa [#allocation8], 1
    %s1389 = scalar_lea.sflag [#allocation8], 1
    %1390 = vsyncpa %s1389, 1

</llo_original>
